<compile_context>
chip_gen: v5e
topology: v5e:2x2
jax: 0.10.0
libtpu: 0.0.40
codegen_flags: <defaults>
</compile_context>

<pallas_src>
import jax
import jax.numpy as jnp
from jax.experimental import pallas as pl
from jax.experimental.pallas import tpu as pltpu

VMEM_LIMIT = 48 * 1024 * 1024   # fits v7x's 64 MiB physical VMEM with headroom
FUSED_MAX_N = 2048              # whole forward fits comfortably in VMEM up to here


# ----------------------------------------------------------------------------
# Path 1 (small graphs): whole forward in ONE pallas_call, everything resident.
# ----------------------------------------------------------------------------
def _gcnjk_fused_kernel(a_ref, dinv_ref, x_ref, w1_ref, scale1_ref, shift1_ref,
                        w2_ref, b2_ref, wf_ref, bf_ref, o_ref):
    f32, bf16 = jnp.float32, jnp.bfloat16
    a = a_ref[...]                       # (N, N) exact A+I counts (bf16-exact)
    dinv = dinv_ref[...]                 # (N, 1) D^{-1/2}, f32

    # layer 1: GCNConv -> BatchNorm(eval, conv bias folded in) -> ReLU
    z1 = jnp.dot(x_ref[...], w1_ref[...], preferred_element_type=f32)
    z1 = (z1 * dinv).astype(bf16)                       # exact col-scale fold
    h1 = jnp.dot(a, z1, preferred_element_type=f32) * dinv   # exact row-scale
    x1 = jnp.maximum(h1 * scale1_ref[...] + shift1_ref[...], 0.0)   # f32

    # layer 2: GCNConv (last conv: no BN / activation)
    z2 = jnp.dot(x1.astype(bf16), w2_ref[...], preferred_element_type=f32)
    z2 = (z2 * dinv).astype(bf16)
    h2 = jnp.dot(a, z2, preferred_element_type=f32) * dinv + b2_ref[...]

    # JumpingKnowledge('max') on f32 operands + final Linear, fully fused
    xjk = jnp.maximum(x1, h2)
    o_ref[...] = (jnp.dot(xjk.astype(bf16), wf_ref[...],
                          preferred_element_type=f32)
                  + bf_ref[...]).astype(o_ref.dtype)


def gcnjk_forward_fused(a_hat, dinv, x, w1, scale1, shift1, w2, b2, wf, bf):
    n = a_hat.shape[0]
    fin, hid = w1.shape
    c = wf.shape[1]
    const = lambda i: (0, 0)
    return pl.pallas_call(
        _gcnjk_fused_kernel,
        out_shape=jax.ShapeDtypeStruct((n, c), jnp.float32),
        grid=(1,),
        in_specs=[
            pl.BlockSpec((n, n), const),        # A+I
            pl.BlockSpec((n, 1), const),        # d^{-1/2}
            pl.BlockSpec((n, fin), const),      # X
            pl.BlockSpec((fin, hid), const),    # W1
            pl.BlockSpec((1, hid), const),      # BN scale (conv bias folded)
            pl.BlockSpec((1, hid), const),      # BN shift
            pl.BlockSpec((hid, hid), const),    # W2
            pl.BlockSpec((1, hid), const),      # b2
            pl.BlockSpec((hid, c), const),      # Wf
            pl.BlockSpec((1, c), const),        # bf
        ],
        out_specs=pl.BlockSpec((n, c), const),
        compiler_params=pltpu.CompilerParams(
            dimension_semantics=("arbitrary",),
            vmem_limit_bytes=VMEM_LIMIT,
        ),
    )(a_hat, dinv, x, w1, scale1, shift1, w2, b2, wf, bf)


# ----------------------------------------------------------------------------
# Path 2 (large graphs): 3 row-tiled calls, Z resident, A streamed in strips.
# ----------------------------------------------------------------------------
def _project_kernel(x_ref, w_ref, dinv_ref, o_ref):
    # Z1 = (X @ W1) * d^{-1/2}   (column-scale fold done once here)
    z = jnp.dot(x_ref[...], w_ref[...], preferred_element_type=jnp.float32)
    o_ref[...] = (z * dinv_ref[...]).astype(o_ref.dtype)


def _layer1_fused_kernel(a_ref, z1_ref, dinv_ref, scale_ref, shift_ref, w2_ref,
                         x1_ref, z2_ref):
    # X1 = relu(BN(A_norm @ Z1 + b1))  and  Z2 = (X1 @ W2) * d^{-1/2}, fused.
    h1 = jnp.dot(a_ref[...], z1_ref[...], preferred_element_type=jnp.float32)
    x1 = jnp.maximum(h1 * dinv_ref[...] * scale_ref[...] + shift_ref[...], 0.0)
    x1_ref[...] = x1.astype(x1_ref.dtype)               # f32 out (for JK max)
    z2 = jnp.dot(x1.astype(jnp.bfloat16), w2_ref[...],
                 preferred_element_type=jnp.float32)
    z2_ref[...] = (z2 * dinv_ref[...]).astype(z2_ref.dtype)


def _layer2_fused_kernel(a_ref, z2_ref, dinv_ref, b2_ref, x1_ref, wf_ref,
                         bf_ref, o_ref):
    # OUT = max(X1, A_norm @ Z2 + b2) @ Wf + bf, fused.
    h2 = jnp.dot(a_ref[...], z2_ref[...], preferred_element_type=jnp.float32)
    h2 = h2 * dinv_ref[...] + b2_ref[...]
    xjk = jnp.maximum(x1_ref[...], h2)
    o_ref[...] = (jnp.dot(xjk.astype(jnp.bfloat16), wf_ref[...],
                          preferred_element_type=jnp.float32)
                  + bf_ref[...]).astype(o_ref.dtype)


def gcnjk_forward_tiled(a_hat, dinv, x, w1, scale1, shift1, w2, b2, wf, bf, *,
                        tm):
    n = a_hat.shape[0]
    fin, hid = w1.shape
    c = wf.shape[1]
    grid = (n // tm,)
    cparams = pltpu.CompilerParams(
        dimension_semantics=("parallel",),   # row tiles shard across v7x's 2 TCs
        vmem_limit_bytes=VMEM_LIMIT,
    )

    z1 = pl.pallas_call(
        _project_kernel,
        out_shape=jax.ShapeDtypeStruct((n, hid), jnp.bfloat16),
        grid=grid,
        in_specs=[pl.BlockSpec((tm, fin), lambda i: (i, 0)),
                  pl.BlockSpec((fin, hid), lambda i: (0, 0)),
                  pl.BlockSpec((tm, 1), lambda i: (i, 0))],
        out_specs=pl.BlockSpec((tm, hid), lambda i: (i, 0)),
        compiler_params=cparams,
    )(x, w1, dinv)

    x1, z2 = pl.pallas_call(
        _layer1_fused_kernel,
        out_shape=(jax.ShapeDtypeStruct((n, hid), jnp.float32),
                   jax.ShapeDtypeStruct((n, hid), jnp.bfloat16)),
        grid=grid,
        in_specs=[pl.BlockSpec((tm, n), lambda i: (i, 0)),      # A row strip
                  pl.BlockSpec((n, hid), lambda i: (0, 0)),     # Z1 resident
                  pl.BlockSpec((tm, 1), lambda i: (i, 0)),
                  pl.BlockSpec((1, hid), lambda i: (0, 0)),
                  pl.BlockSpec((1, hid), lambda i: (0, 0)),
                  pl.BlockSpec((hid, hid), lambda i: (0, 0))],
        out_specs=(pl.BlockSpec((tm, hid), lambda i: (i, 0)),
                   pl.BlockSpec((tm, hid), lambda i: (i, 0))),
        compiler_params=cparams,
    )(a_hat, z1, dinv, scale1, shift1, w2)

    return pl.pallas_call(
        _layer2_fused_kernel,
        out_shape=jax.ShapeDtypeStruct((n, c), jnp.float32),
        grid=grid,
        in_specs=[pl.BlockSpec((tm, n), lambda i: (i, 0)),      # A row strip
                  pl.BlockSpec((n, hid), lambda i: (0, 0)),     # Z2 resident
                  pl.BlockSpec((tm, 1), lambda i: (i, 0)),
                  pl.BlockSpec((1, hid), lambda i: (0, 0)),
                  pl.BlockSpec((tm, hid), lambda i: (i, 0)),    # X1 tile
                  pl.BlockSpec((hid, c), lambda i: (0, 0)),
                  pl.BlockSpec((1, c), lambda i: (0, 0))],
        out_specs=pl.BlockSpec((tm, c), lambda i: (i, 0)),
        compiler_params=cparams,
    )(a_hat, z2, dinv, b2, x1, wf, bf)


def gcnjk_forward(a_hat, dinv, x, w1, scale1, shift1, w2, b2, wf, bf, *,
                  force_tiled=False):
    n = a_hat.shape[0]
    if n <= FUSED_MAX_N and not force_tiled:
        return gcnjk_forward_fused(a_hat, dinv, x, w1, scale1, shift1,
                                   w2, b2, wf, bf)
    tm = 256 if (n % 256 == 0 and n >= 512) else 128   # keep >=2 row tiles (v7x)
    return gcnjk_forward_tiled(a_hat, dinv, x, w1, scale1, shift1,
                               w2, b2, wf, bf, tm=tm)


# ----------------------------------------------------------------------------
# Pure-JAX reference mirroring the kernels' exact cast pattern
# ----------------------------------------------------------------------------
def gcnjk_reference(a_hat, dinv, x, w1, scale1, shift1, w2, b2, wf, bf):
    f32, bf16 = jnp.float32, jnp.bfloat16
    z1 = (jnp.dot(x, w1, preferred_element_type=f32) * dinv).astype(bf16)
    h1 = jnp.dot(a_hat, z1, preferred_element_type=f32) * dinv
    x1 = jnp.maximum(h1 * scale1 + shift1, 0.0)
    z2 = (jnp.dot(x1.astype(bf16), w2, preferred_element_type=f32)
          * dinv).astype(bf16)
    h2 = jnp.dot(a_hat, z2, preferred_element_type=f32) * dinv + b2
    xjk = jnp.maximum(x1, h2)
    return jnp.dot(xjk.astype(bf16), wf, preferred_element_type=f32) + bf


# ----------------------------------------------------------------------------
# Glue: adjacency, padding, parameter init
# ----------------------------------------------------------------------------
def build_adjacency(edge_index, num_nodes):
    """Exact A+I (PyG convention A[dst, src] = 1) and d^{-1/2} vector."""
    src, dst = edge_index[0], edge_index[1]
    a = jnp.zeros((num_nodes, num_nodes), jnp.float32)
    a = a.at[dst, src].add(1.0)
    a = a + jnp.eye(num_nodes, dtype=jnp.float32)
    deg = a.sum(axis=1)
    dinv_sqrt = jnp.where(deg > 0, jax.lax.rsqrt(deg), 0.0)
    return a, dinv_sqrt


def glorot_uniform(key, shape):
    fan_in, fan_out = shape
    limit = (6.0 / (fan_in + fan_out)) ** 0.5
    return jax.random.uniform(key, shape, jnp.float32, -limit, limit)


def _round_up(v, m):
    return ((v + m - 1) // m) * m


def _pad2(a, rows, cols):
    return jnp.pad(a, ((0, rows - a.shape[0]), (0, cols - a.shape[1])))


def _pad1(a, cols):
    return jnp.pad(a, (0, cols - a.shape[0]))


if __name__ == "__main__":
    N = 256
    IN_CHANNELS = 96
    HIDDEN_CHANNELS = 64
    OUT_CHANNELS = 16
    NUM_EDGES = 2048
    BN_EPS = 1e-5

    N_P = _round_up(N, 128)
    IN_P = _round_up(IN_CHANNELS, 128)
    HID_P = _round_up(HIDDEN_CHANNELS, 128)
    OUT_P = _round_up(OUT_CHANNELS, 128)

    key = jax.random.PRNGKey(0)
    (k_x, k_src, k_dst, k_w1, k_b1, k_g, k_beta, k_mu, k_var,
     k_w2, k_b2, k_wf, k_bf) = jax.random.split(key, 13)

    # Graph (deterministic).
    x = jax.random.normal(k_x, (N, IN_CHANNELS), jnp.float32)
    src = jax.random.randint(k_src, (NUM_EDGES,), 0, N)
    dst = jax.random.randint(k_dst, (NUM_EDGES,), 0, N)
    edge_index = jnp.stack([src, dst], axis=0)
    a_hat, dinv_sqrt = build_adjacency(edge_index, N)

    # Parameters (deterministic).
    w1 = glorot_uniform(k_w1, (IN_CHANNELS, HIDDEN_CHANNELS))
    b1 = 0.01 * jax.random.normal(k_b1, (HIDDEN_CHANNELS,), jnp.float32)
    bn_gamma = 1.0 + 0.1 * jax.random.normal(k_g, (HIDDEN_CHANNELS,), jnp.float32)
    bn_beta = 0.1 * jax.random.normal(k_beta, (HIDDEN_CHANNELS,), jnp.float32)
    bn_mean = 0.1 * jax.random.normal(k_mu, (HIDDEN_CHANNELS,), jnp.float32)
    bn_var = jax.random.uniform(k_var, (HIDDEN_CHANNELS,), jnp.float32, 0.5, 1.5)
    w2 = glorot_uniform(k_w2, (HIDDEN_CHANNELS, HIDDEN_CHANNELS))
    b2 = 0.01 * jax.random.normal(k_b2, (HIDDEN_CHANNELS,), jnp.float32)
    wf = glorot_uniform(k_wf, (HIDDEN_CHANNELS, OUT_CHANNELS))
    bfin = 0.01 * jax.random.normal(k_bf, (OUT_CHANNELS,), jnp.float32)

    # Fold conv-1 bias + eval-mode BatchNorm into one per-channel affine.
    s1 = bn_gamma * jax.lax.rsqrt(bn_var + BN_EPS)
    t1 = (b1 - bn_mean) * s1 + bn_beta

    # Pad N and feature/class dims (lane dense, no remainder dropping);
    # cast MXU operands to bf16.  A+I is small exact integers -> bf16-exact;
    # the D^{-1/2} normalization stays in f32 via the dinv fold.
    a_bf = _pad2(a_hat, N_P, N_P).astype(jnp.bfloat16)
    dinv = _pad1(dinv_sqrt, N_P).reshape(N_P, 1).astype(jnp.float32)
    x_bf = _pad2(x, N_P, IN_P).astype(jnp.bfloat16)
    w1_bf = _pad2(w1, IN_P, HID_P).astype(jnp.bfloat16)
    w2_bf = _pad2(w2, HID_P, HID_P).astype(jnp.bfloat16)
    wf_bf = _pad2(wf, HID_P, OUT_P).astype(jnp.bfloat16)
    scale1 = _pad1(s1, HID_P).reshape(1, HID_P)
    shift1 = _pad1(t1, HID_P).reshape(1, HID_P)
    b2_p = _pad1(b2, HID_P).reshape(1, HID_P)
    bf_p = _pad1(bfin, OUT_P).reshape(1, OUT_P)

    args = (a_bf, dinv, x_bf, w1_bf, scale1, shift1, w2_bf, b2_p, wf_bf, bf_p)

    ref = gcnjk_reference(*args)[:N, :OUT_CHANNELS]

    # Fused single-launch path (default at this size).
    out_fused = jax.block_until_ready(
        gcnjk_forward(*args))[:N, :OUT_CHANNELS]
    assert out_fused.shape == (N, OUT_CHANNELS)
    assert jnp.allclose(out_fused, ref, atol=1e-2, rtol=1e-2), \
        float(jnp.max(jnp.abs(out_fused - ref)))

    # Row-tiled large-graph path (exercised here for correctness).
    out_tiled = jax.block_until_ready(
        gcnjk_forward(*args, force_tiled=True))[:N, :OUT_CHANNELS]
    assert jnp.allclose(out_tiled, ref, atol=1e-2, rtol=1e-2), \
        float(jnp.max(jnp.abs(out_tiled - ref)))

    print("KERNEL_OK")
</pallas_src>

<mosaic_0001>
module attributes {stable_mosaic.version = 11 : i64} {
  func.func @_gcnjk_fused_kernel(%arg0: i32, %arg1: memref<256x256xbf16, #tpu.memory_space<vmem>>, %arg2: memref<256x1xf32, #tpu.memory_space<vmem>>, %arg3: memref<256x128xbf16, #tpu.memory_space<vmem>>, %arg4: memref<128x128xbf16, #tpu.memory_space<vmem>>, %arg5: memref<1x128xf32, #tpu.memory_space<vmem>>, %arg6: memref<1x128xf32, #tpu.memory_space<vmem>>, %arg7: memref<128x128xbf16, #tpu.memory_space<vmem>>, %arg8: memref<1x128xf32, #tpu.memory_space<vmem>>, %arg9: memref<128x128xbf16, #tpu.memory_space<vmem>>, %arg10: memref<1x128xf32, #tpu.memory_space<vmem>>, %arg11: memref<256x128xf32, #tpu.memory_space<vmem>>) attributes {dimension_semantics = [#tpu.dimension_semantics<arbitrary>], iteration_bounds = array<i64: 1>, scalar_prefetch = 0 : i64, scratch_operands = 0 : i64, tpu.core_type = #tpu.core_type<tc>, window_params = [{pipeline_mode = #tpu.pipeline_mode<synchronous>, transform_indices = @transform_0, window_bounds = array<i64: 256, 256>}, {pipeline_mode = #tpu.pipeline_mode<synchronous>, transform_indices = @transform_1, window_bounds = array<i64: 256, 1>}, {pipeline_mode = #tpu.pipeline_mode<synchronous>, transform_indices = @transform_2, window_bounds = array<i64: 256, 128>}, {pipeline_mode = #tpu.pipeline_mode<synchronous>, transform_indices = @transform_3, window_bounds = array<i64: 128, 128>}, {pipeline_mode = #tpu.pipeline_mode<synchronous>, transform_indices = @transform_4, window_bounds = array<i64: 1, 128>}, {pipeline_mode = #tpu.pipeline_mode<synchronous>, transform_indices = @transform_5, window_bounds = array<i64: 1, 128>}, {pipeline_mode = #tpu.pipeline_mode<synchronous>, transform_indices = @transform_6, window_bounds = array<i64: 128, 128>}, {pipeline_mode = #tpu.pipeline_mode<synchronous>, transform_indices = @transform_7, window_bounds = array<i64: 1, 128>}, {pipeline_mode = #tpu.pipeline_mode<synchronous>, transform_indices = @transform_8, window_bounds = array<i64: 128, 128>}, {pipeline_mode = #tpu.pipeline_mode<synchronous>, transform_indices = @transform_9, window_bounds = array<i64: 1, 128>}, {pipeline_mode = #tpu.pipeline_mode<synchronous>, transform_indices = @transform_10, window_bounds = array<i64: 256, 128>}]} {
    %c0 = arith.constant 0 : index
    %c0_0 = arith.constant 0 : index
    %0 = vector.load %arg1[%c0, %c0_0] : memref<256x256xbf16, #tpu.memory_space<vmem>>, vector<256x256xbf16>
    %c0_1 = arith.constant 0 : index
    %c0_2 = arith.constant 0 : index
    %1 = vector.load %arg2[%c0_1, %c0_2] : memref<256x1xf32, #tpu.memory_space<vmem>>, vector<256x1xf32>
    %c0_3 = arith.constant 0 : index
    %c0_4 = arith.constant 0 : index
    %2 = vector.load %arg3[%c0_3, %c0_4] : memref<256x128xbf16, #tpu.memory_space<vmem>>, vector<256x128xbf16>
    %c0_5 = arith.constant 0 : index
    %c0_6 = arith.constant 0 : index
    %3 = vector.load %arg4[%c0_5, %c0_6] : memref<128x128xbf16, #tpu.memory_space<vmem>>, vector<128x128xbf16>
    %cst = arith.constant dense<0.000000e+00> : vector<256x128xf32>
    %4 = tpu.matmul %2, %3, %cst {dimension_numbers = #tpu.dot_dimension_numbers<[1], [0], [0], [1], [0, 0, 1, 1], [], []>} : vector<256x128xbf16>, vector<128x128xbf16>, vector<256x128xf32> -> vector<256x128xf32>
    %5 = vector.broadcast %1 : vector<256x1xf32> to vector<256x128xf32>
    %6 = arith.mulf %4, %5 : vector<256x128xf32>
    %7 = arith.truncf %6 : vector<256x128xf32> to vector<256x128xbf16>
    %cst_7 = arith.constant dense<0.000000e+00> : vector<256x128xf32>
    %8 = tpu.matmul %0, %7, %cst_7 {dimension_numbers = #tpu.dot_dimension_numbers<[1], [0], [0], [1], [0, 0, 1, 1], [], []>} : vector<256x256xbf16>, vector<256x128xbf16>, vector<256x128xf32> -> vector<256x128xf32>
    %9 = vector.broadcast %1 : vector<256x1xf32> to vector<256x128xf32>
    %10 = arith.mulf %8, %9 : vector<256x128xf32>
    %c0_8 = arith.constant 0 : index
    %c0_9 = arith.constant 0 : index
    %11 = vector.load %arg5[%c0_8, %c0_9] : memref<1x128xf32, #tpu.memory_space<vmem>>, vector<1x128xf32>
    %12 = vector.broadcast %11 : vector<1x128xf32> to vector<256x128xf32>
    %13 = arith.mulf %10, %12 : vector<256x128xf32>
    %c0_10 = arith.constant 0 : index
    %c0_11 = arith.constant 0 : index
    %14 = vector.load %arg6[%c0_10, %c0_11] : memref<1x128xf32, #tpu.memory_space<vmem>>, vector<1x128xf32>
    %15 = vector.broadcast %14 : vector<1x128xf32> to vector<256x128xf32>
    %16 = arith.addf %13, %15 : vector<256x128xf32>
    %cst_12 = arith.constant 0.000000e+00 : f32
    %17 = vector.broadcast %cst_12 : f32 to vector<256x128xf32>
    %18 = arith.maximumf %16, %17 : vector<256x128xf32>
    %19 = arith.truncf %18 : vector<256x128xf32> to vector<256x128xbf16>
    %c0_13 = arith.constant 0 : index
    %c0_14 = arith.constant 0 : index
    %20 = vector.load %arg7[%c0_13, %c0_14] : memref<128x128xbf16, #tpu.memory_space<vmem>>, vector<128x128xbf16>
    %cst_15 = arith.constant dense<0.000000e+00> : vector<256x128xf32>
    %21 = tpu.matmul %19, %20, %cst_15 {dimension_numbers = #tpu.dot_dimension_numbers<[1], [0], [0], [1], [0, 0, 1, 1], [], []>} : vector<256x128xbf16>, vector<128x128xbf16>, vector<256x128xf32> -> vector<256x128xf32>
    %22 = vector.broadcast %1 : vector<256x1xf32> to vector<256x128xf32>
    %23 = arith.mulf %21, %22 : vector<256x128xf32>
    %24 = arith.truncf %23 : vector<256x128xf32> to vector<256x128xbf16>
    %cst_16 = arith.constant dense<0.000000e+00> : vector<256x128xf32>
    %25 = tpu.matmul %0, %24, %cst_16 {dimension_numbers = #tpu.dot_dimension_numbers<[1], [0], [0], [1], [0, 0, 1, 1], [], []>} : vector<256x256xbf16>, vector<256x128xbf16>, vector<256x128xf32> -> vector<256x128xf32>
    %26 = vector.broadcast %1 : vector<256x1xf32> to vector<256x128xf32>
    %27 = arith.mulf %25, %26 : vector<256x128xf32>
    %c0_17 = arith.constant 0 : index
    %c0_18 = arith.constant 0 : index
    %28 = vector.load %arg8[%c0_17, %c0_18] : memref<1x128xf32, #tpu.memory_space<vmem>>, vector<1x128xf32>
    %29 = vector.broadcast %28 : vector<1x128xf32> to vector<256x128xf32>
    %30 = arith.addf %27, %29 : vector<256x128xf32>
    %31 = arith.maximumf %18, %30 : vector<256x128xf32>
    %32 = arith.truncf %31 : vector<256x128xf32> to vector<256x128xbf16>
    %c0_19 = arith.constant 0 : index
    %c0_20 = arith.constant 0 : index
    %33 = vector.load %arg9[%c0_19, %c0_20] : memref<128x128xbf16, #tpu.memory_space<vmem>>, vector<128x128xbf16>
    %cst_21 = arith.constant dense<0.000000e+00> : vector<256x128xf32>
    %34 = tpu.matmul %32, %33, %cst_21 {dimension_numbers = #tpu.dot_dimension_numbers<[1], [0], [0], [1], [0, 0, 1, 1], [], []>} : vector<256x128xbf16>, vector<128x128xbf16>, vector<256x128xf32> -> vector<256x128xf32>
    %c0_22 = arith.constant 0 : index
    %c0_23 = arith.constant 0 : index
    %35 = vector.load %arg10[%c0_22, %c0_23] : memref<1x128xf32, #tpu.memory_space<vmem>>, vector<1x128xf32>
    %36 = vector.broadcast %35 : vector<1x128xf32> to vector<256x128xf32>
    %37 = arith.addf %34, %36 : vector<256x128xf32>
    %c0_24 = arith.constant 0 : index
    %c0_25 = arith.constant 0 : index
    %38 = vector.load %arg11[%c0_24, %c0_25] : memref<256x128xf32, #tpu.memory_space<vmem>>, vector<256x128xf32>
    tpu.vector_store %arg11[%c0_24, %c0_25], %37 {strides = array<i32>} : memref<256x128xf32, #tpu.memory_space<vmem>>, vector<256x128xf32>,
    return
  }
  func.func @transform_0(%arg0: i32) -> (i32, i32) {
    %c0_i32 = arith.constant 0 : i32
    %c0_i32_0 = arith.constant 0 : i32
    %c0_i32_1 = arith.constant 0 : i32
    return %c0_i32, %c0_i32_0 : i32, i32
  }
  func.func @transform_1(%arg0: i32) -> (i32, i32) {
    %c0_i32 = arith.constant 0 : i32
    %c0_i32_0 = arith.constant 0 : i32
    %c0_i32_1 = arith.constant 0 : i32
    return %c0_i32, %c0_i32_0 : i32, i32
  }
  func.func @transform_2(%arg0: i32) -> (i32, i32) {
    %c0_i32 = arith.constant 0 : i32
    %c0_i32_0 = arith.constant 0 : i32
    %c0_i32_1 = arith.constant 0 : i32
    return %c0_i32, %c0_i32_0 : i32, i32
  }
  func.func @transform_3(%arg0: i32) -> (i32, i32) {
    %c0_i32 = arith.constant 0 : i32
    %c0_i32_0 = arith.constant 0 : i32
    %c0_i32_1 = arith.constant 0 : i32
    return %c0_i32, %c0_i32_0 : i32, i32
  }
  func.func @transform_4(%arg0: i32) -> (i32, i32) {
    %c0_i32 = arith.constant 0 : i32
    %c0_i32_0 = arith.constant 0 : i32
    %c0_i32_1 = arith.constant 0 : i32
    return %c0_i32, %c0_i32_0 : i32, i32
  }
  func.func @transform_5(%arg0: i32) -> (i32, i32) {
    %c0_i32 = arith.constant 0 : i32
    %c0_i32_0 = arith.constant 0 : i32
    %c0_i32_1 = arith.constant 0 : i32
    return %c0_i32, %c0_i32_0 : i32, i32
  }
  func.func @transform_6(%arg0: i32) -> (i32, i32) {
    %c0_i32 = arith.constant 0 : i32
    %c0_i32_0 = arith.constant 0 : i32
    %c0_i32_1 = arith.constant 0 : i32
    return %c0_i32, %c0_i32_0 : i32, i32
  }
  func.func @transform_7(%arg0: i32) -> (i32, i32) {
    %c0_i32 = arith.constant 0 : i32
    %c0_i32_0 = arith.constant 0 : i32
    %c0_i32_1 = arith.constant 0 : i32
    return %c0_i32, %c0_i32_0 : i32, i32
  }
  func.func @transform_8(%arg0: i32) -> (i32, i32) {
    %c0_i32 = arith.constant 0 : i32
    %c0_i32_0 = arith.constant 0 : i32
    %c0_i32_1 = arith.constant 0 : i32
    return %c0_i32, %c0_i32_0 : i32, i32
  }
  func.func @transform_9(%arg0: i32) -> (i32, i32) {
    %c0_i32 = arith.constant 0 : i32
    %c0_i32_0 = arith.constant 0 : i32
    %c0_i32_1 = arith.constant 0 : i32
    return %c0_i32, %c0_i32_0 : i32, i32
  }
  func.func @transform_10(%arg0: i32) -> (i32, i32) {
    %c0_i32 = arith.constant 0 : i32
    %c0_i32_0 = arith.constant 0 : i32
    %c0_i32_1 = arith.constant 0 : i32
    return %c0_i32, %c0_i32_0 : i32, i32
  }
}

</mosaic_0001>

<llo_original>
// kernel: tpu_custom_call.1
$region0: #{tpu_custom_call.1}
  #allocation0 [shape = 'u32[]', space=smem, size = 0x4, offset = 0x4, fixed_abs, tag = 'smem constant byte address 0x4 - core index']
  #allocation1 [shape = 'u32[72,128]{1,0:T(1,128)}', space=vmem, size = 0x9000, scoped, tag = 'internal scratch']
  %s0 = inlined_call_operand.vmem [shape: bf16[256,256], index: 0, kind: input, shape index: {}]
  %s1 = inlined_call_operand.vmem [shape: f32[256,1], index: 1, kind: input, shape index: {}]
  %s2 = inlined_call_operand.hbm [shape: bf16[256,128], index: 2, kind: input, shape index: {}]
  %s3 = inlined_call_operand.hbm [shape: bf16[128,128], index: 3, kind: input, shape index: {}]
  %s4 = inlined_call_operand.vmem [shape: f32[1,128], index: 4, kind: input, shape index: {}]
  %s5 = inlined_call_operand.vmem [shape: f32[1,128], index: 5, kind: input, shape index: {}]
  %s6 = inlined_call_operand.hbm [shape: bf16[128,128], index: 6, kind: input, shape index: {}]
  %s7 = inlined_call_operand.vmem [shape: f32[1,128], index: 7, kind: input, shape index: {}]
  %s8 = inlined_call_operand.hbm [shape: bf16[128,128], index: 8, kind: input, shape index: {}]
  %s9 = inlined_call_operand.vmem [shape: f32[1,128], index: 9, kind: input, shape index: {}]
  %s10 = inlined_call_operand.hbm [shape: f32[256,128], index: 10, kind: output, shape index: {}]
  %s11 = sld [smem:[#allocation0]]
  $region66: #{tpu_custom_call.1} parent=0
    _
  %s13 = ssub.s32 1, %s11
  %s14 = scalar_select 0, %s13, %s11
  $region1: #{tpu_custom_call.1} parent=0
    #allocation2 [shape = 'u8[65536]{0}', space=vmem, size = 0x10000, scoped, tag = 'input window, operand 2, single buffered']
    #allocation3 [shape = 's32[1]{0}', space=sflag, size = 0x4, scoped, tag = 'scoped memory for tpu_custom_call.1']
    #allocation4 [shape = 's32[1]{0}', space=sflag, size = 0x4, scoped, tag = 'scoped memory for tpu_custom_call.1']
    #allocation5 [shape = 'u8[32768]{0}', space=vmem, size = 0x8000, scoped, tag = 'input window, operand 3, single buffered']
    #allocation6 [shape = 's32[1]{0}', space=sflag, size = 0x4, scoped, tag = 'scoped memory for tpu_custom_call.1']
    #allocation7 [shape = 'u8[32768]{0}', space=vmem, size = 0x8000, scoped, tag = 'input window, operand 6, single buffered']
    #allocation8 [shape = 'u8[32768]{0}', space=vmem, size = 0x8000, scoped, tag = 'input window, operand 8, single buffered']
    #allocation9 [shape = 's32[1]{0}', space=sflag, size = 0x4, scoped, tag = 'scoped memory for tpu_custom_call.1']
    #allocation10 [shape = 'u8[131072]{0}', space=vmem, size = 0x20000, scoped, tag = 'output window, operand 0, single buffered']
    %15 = vsyncpa [#allocation3], 0
    %16 = vsyncpa [#allocation6], 0
    %17 = vsyncpa [#allocation9], 0
    %18 = vsyncpa [#allocation4], 0
    // Predicated region
    $region2: #{tpu_custom_call.1} parent=1 // pred_check
      _
    $region3: #{tpu_custom_call.1} parent=1 // pred_check_branch
      %20 = sbr.rel (0) target = $region5
    $region4: #{tpu_custom_call.1} parent=1 // pred_region
      _
    $region5: #{tpu_custom_call.1} parent=1 // pred_fallthru
      _
    // Predicated region
    $region6: #{tpu_custom_call.1} parent=1 // pred_check
      _
    $region7: #{tpu_custom_call.1} parent=1 // pred_check_branch
      %22 = sbr.rel (0) target = $region9
    $region8: #{tpu_custom_call.1} parent=1 // pred_region
      _
    $region9: #{tpu_custom_call.1} parent=1 // pred_fallthru
      _
    // Predicated region
    $region10: #{tpu_custom_call.1} parent=1 // pred_check
      _
    $region11: #{tpu_custom_call.1} parent=1 // pred_check_branch
      %24 = sbr.rel (0) target = $region13
    $region12: #{tpu_custom_call.1} parent=1 // pred_region
      %26 = vsyncadd [#allocation3], 0
      %s27 = sshll.u32 %s2, 4
      %s28 = int_to_ptr.hbm [resolvable:$true] %s27
      %s29 = sshll.u32 [#allocation2], 4
      %s30 = int_to_ptr.vmem [resolvable:$true] %s29
      %35 = dma.hbm_to_vmem [thread:$0]  %s28, 2048, %s30, [#allocation3], 64, 64, 4
    $region13: #{tpu_custom_call.1} parent=1 // pred_fallthru
      _
    // Predicated region
    $region14: #{tpu_custom_call.1} parent=1 // pred_check
      _
    $region15: #{tpu_custom_call.1} parent=1 // pred_check_branch
      %37 = sbr.rel (0) target = $region17
    $region16: #{tpu_custom_call.1} parent=1 // pred_region
      %39 = vsyncadd [#allocation6], 0
      %s40 = sshll.u32 %s3, 4
      %s41 = int_to_ptr.hbm [resolvable:$true] %s40
      %s42 = sshll.u32 [#allocation5], 4
      %s43 = int_to_ptr.vmem [resolvable:$true] %s42
      %48 = dma.hbm_to_vmem [thread:$0]  %s41, 1024, %s43, [#allocation6], 64, 64, 4
    $region17: #{tpu_custom_call.1} parent=1 // pred_fallthru
      _
    // Predicated region
    $region18: #{tpu_custom_call.1} parent=1 // pred_check
      _
    $region19: #{tpu_custom_call.1} parent=1 // pred_check_branch
      %50 = sbr.rel (0) target = $region21
    $region20: #{tpu_custom_call.1} parent=1 // pred_region
      _
    $region21: #{tpu_custom_call.1} parent=1 // pred_fallthru
      _
    // Predicated region
    $region22: #{tpu_custom_call.1} parent=1 // pred_check
      _
    $region23: #{tpu_custom_call.1} parent=1 // pred_check_branch
      %52 = sbr.rel (0) target = $region25
    $region24: #{tpu_custom_call.1} parent=1 // pred_region
      _
    $region25: #{tpu_custom_call.1} parent=1 // pred_fallthru
      _
    // Predicated region
    $region26: #{tpu_custom_call.1} parent=1 // pred_check
      _
    $region27: #{tpu_custom_call.1} parent=1 // pred_check_branch
      %54 = sbr.rel (0) target = $region29
    $region28: #{tpu_custom_call.1} parent=1 // pred_region
      %56 = vsyncadd [#allocation6], 0
      %s57 = sshll.u32 %s6, 4
      %s58 = int_to_ptr.hbm [resolvable:$true] %s57
      %s59 = sshll.u32 [#allocation7], 4
      %s60 = int_to_ptr.vmem [resolvable:$true] %s59
      %65 = dma.hbm_to_vmem [thread:$0]  %s58, 1024, %s60, [#allocation6], 64, 64, 4
    $region29: #{tpu_custom_call.1} parent=1 // pred_fallthru
      _
    // Predicated region
    $region30: #{tpu_custom_call.1} parent=1 // pred_check
      _
    $region31: #{tpu_custom_call.1} parent=1 // pred_check_branch
      %67 = sbr.rel (0) target = $region33
    $region32: #{tpu_custom_call.1} parent=1 // pred_region
      _
    $region33: #{tpu_custom_call.1} parent=1 // pred_fallthru
      _
    // Predicated region
    $region34: #{tpu_custom_call.1} parent=1 // pred_check
      _
    $region35: #{tpu_custom_call.1} parent=1 // pred_check_branch
      %69 = sbr.rel (0) target = $region37
    $region36: #{tpu_custom_call.1} parent=1 // pred_region
      %71 = vsyncadd [#allocation9], 0
      %s72 = sshll.u32 %s8, 4
      %s73 = int_to_ptr.hbm [resolvable:$true] %s72
      %s74 = sshll.u32 [#allocation8], 4
      %s75 = int_to_ptr.vmem [resolvable:$true] %s74
      %80 = dma.hbm_to_vmem [thread:$0]  %s73, 1024, %s75, [#allocation9], 64, 64, 4
    $region37: #{tpu_custom_call.1} parent=1 // pred_fallthru
      _
    // Predicated region
    $region38: #{tpu_custom_call.1} parent=1 // pred_check
      _
    $region39: #{tpu_custom_call.1} parent=1 // pred_check_branch
      %82 = sbr.rel (0) target = $region41
    $region40: #{tpu_custom_call.1} parent=1 // pred_region
      _
    $region41: #{tpu_custom_call.1} parent=1 // pred_fallthru
      _
    // Predicated region
    $region42: #{tpu_custom_call.1} parent=1 // pred_check
      _
    $region43: #{tpu_custom_call.1} parent=1 // pred_check_branch
      %84 = sbr.rel (0) target = $region45
    $region44: #{tpu_custom_call.1} parent=1 // pred_region
      %86 = dma.done [#allocation3], 2048
    $region45: #{tpu_custom_call.1} parent=1 // pred_fallthru
      _
    // Predicated region
    $region46: #{tpu_custom_call.1} parent=1 // pred_check
      _
    $region47: #{tpu_custom_call.1} parent=1 // pred_check_branch
      %88 = sbr.rel (0) target = $region49
    $region48: #{tpu_custom_call.1} parent=1 // pred_region
      %90 = dma.done [#allocation6], 1024
    $region49: #{tpu_custom_call.1} parent=1 // pred_fallthru
      _
    // Predicated region
    $region50: #{tpu_custom_call.1} parent=1 // pred_check
      _
    $region51: #{tpu_custom_call.1} parent=1 // pred_check_branch
      %92 = sbr.rel (0) target = $region53
    $region52: #{tpu_custom_call.1} parent=1 // pred_region
      %94 = dma.done [#allocation6], 1024
    $region53: #{tpu_custom_call.1} parent=1 // pred_fallthru
      _
    // Predicated region
    $region54: #{tpu_custom_call.1} parent=1 // pred_check
      _
    $region55: #{tpu_custom_call.1} parent=1 // pred_check_branch
      %96 = sbr.rel (0) target = $region57
    $region56: #{tpu_custom_call.1} parent=1 // pred_region
      %98 = dma.done [#allocation9], 1024
    $region57: #{tpu_custom_call.1} parent=1 // pred_fallthru
      _
    %v99 = vld [vmem:[%s0] sm:$0xff]
    %v100 = vld [vmem:[%s0 + $0x8] sm:$0xff]
    %v101 = vld [vmem:[%s0 + $0x10] sm:$0xff]
    %v102 = vld [vmem:[%s0 + $0x18] sm:$0xff]
    %v103 = vld [vmem:[%s0 + $0x20] sm:$0xff]
    %v104 = vld [vmem:[%s0 + $0x28] sm:$0xff]
    %v105 = vld [vmem:[%s0 + $0x30] sm:$0xff]
    %v106 = vld [vmem:[%s0 + $0x38] sm:$0xff]
    %v107 = vld [vmem:[%s0 + $0x40] sm:$0xff]
    %v108 = vld [vmem:[%s0 + $0x48] sm:$0xff]
    %v109 = vld [vmem:[%s0 + $0x50] sm:$0xff]
    %v110 = vld [vmem:[%s0 + $0x58] sm:$0xff]
    %v111 = vld [vmem:[%s0 + $0x60] sm:$0xff]
    %v112 = vld [vmem:[%s0 + $0x68] sm:$0xff]
    %v113 = vld [vmem:[%s0 + $0x70] sm:$0xff]
    %v114 = vld [vmem:[%s0 + $0x78] sm:$0xff]
    %v115 = vld [vmem:[%s0 + $0x80] sm:$0xff]
    %v116 = vld [vmem:[%s0 + $0x88] sm:$0xff]
    %v117 = vld [vmem:[%s0 + $0x90] sm:$0xff]
    %v118 = vld [vmem:[%s0 + $0x98] sm:$0xff]
    %v119 = vld [vmem:[%s0 + $0xa0] sm:$0xff]
    %v120 = vld [vmem:[%s0 + $0xa8] sm:$0xff]
    %v121 = vld [vmem:[%s0 + $0xb0] sm:$0xff]
    %v122 = vld [vmem:[%s0 + $0xb8] sm:$0xff]
    %v123 = vld [vmem:[%s0 + $0xc0] sm:$0xff]
    %v124 = vld [vmem:[%s0 + $0xc8] sm:$0xff]
    %v125 = vld [vmem:[%s0 + $0xd0] sm:$0xff]
    %v126 = vld [vmem:[%s0 + $0xd8] sm:$0xff]
    %v127 = vld [vmem:[%s0 + $0xe0] sm:$0xff]
    %v128 = vld [vmem:[%s0 + $0xe8] sm:$0xff]
    %v129 = vld [vmem:[%s0 + $0xf0] sm:$0xff]
    %v130 = vld [vmem:[%s0 + $0xf8] sm:$0xff]
    %v131 = vld [vmem:[%s1] sm:$0xff]
    %v132 = vld [vmem:[%s1 + $0x8] sm:$0xff]
    %v133 = vld [vmem:[%s1 + $0x10] sm:$0xff]
    %v134 = vld [vmem:[%s1 + $0x18] sm:$0xff]
    %v135 = vld [vmem:[%s1 + $0x20] sm:$0xff]
    %v136 = vld [vmem:[%s1 + $0x28] sm:$0xff]
    %v137 = vld [vmem:[%s1 + $0x30] sm:$0xff]
    %v138 = vld [vmem:[%s1 + $0x38] sm:$0xff]
    %v139 = vld [vmem:[%s1 + $0x40] sm:$0xff]
    %v140 = vld [vmem:[%s1 + $0x48] sm:$0xff]
    %v141 = vld [vmem:[%s1 + $0x50] sm:$0xff]
    %v142 = vld [vmem:[%s1 + $0x58] sm:$0xff]
    %v143 = vld [vmem:[%s1 + $0x60] sm:$0xff]
    %v144 = vld [vmem:[%s1 + $0x68] sm:$0xff]
    %v145 = vld [vmem:[%s1 + $0x70] sm:$0xff]
    %v146 = vld [vmem:[%s1 + $0x78] sm:$0xff]
    %v147 = vld [vmem:[%s1 + $0x80] sm:$0xff]
    %v148 = vld [vmem:[%s1 + $0x88] sm:$0xff]
    %v149 = vld [vmem:[%s1 + $0x90] sm:$0xff]
    %v150 = vld [vmem:[%s1 + $0x98] sm:$0xff]
    %v151 = vld [vmem:[%s1 + $0xa0] sm:$0xff]
    %v152 = vld [vmem:[%s1 + $0xa8] sm:$0xff]
    %v153 = vld [vmem:[%s1 + $0xb0] sm:$0xff]
    %v154 = vld [vmem:[%s1 + $0xb8] sm:$0xff]
    %v155 = vld [vmem:[%s1 + $0xc0] sm:$0xff]
    %v156 = vld [vmem:[%s1 + $0xc8] sm:$0xff]
    %v157 = vld [vmem:[%s1 + $0xd0] sm:$0xff]
    %v158 = vld [vmem:[%s1 + $0xd8] sm:$0xff]
    %v159 = vld [vmem:[%s1 + $0xe0] sm:$0xff]
    %v160 = vld [vmem:[%s1 + $0xe8] sm:$0xff]
    %v161 = vld [vmem:[%s1 + $0xf0] sm:$0xff]
    %v162 = vld [vmem:[%s1 + $0xf8] sm:$0xff]
    %v163 = vld [vmem:[#allocation2] sm:$0xf]
    %v164 = vld [vmem:[#allocation2 + $0x4] sm:$0xf]
    %v165 = vld [vmem:[#allocation2 + $0x8] sm:$0xf]
    %v166 = vld [vmem:[#allocation2 + $0xc] sm:$0xf]
    %v167 = vld [vmem:[#allocation2 + $0x10] sm:$0xf]
    %v168 = vld [vmem:[#allocation2 + $0x14] sm:$0xf]
    %v169 = vld [vmem:[#allocation2 + $0x18] sm:$0xf]
    %v170 = vld [vmem:[#allocation2 + $0x1c] sm:$0xf]
    %v171 = vld [vmem:[#allocation2 + $0x20] sm:$0xf]
    %v172 = vld [vmem:[#allocation2 + $0x24] sm:$0xf]
    %v173 = vld [vmem:[#allocation2 + $0x28] sm:$0xf]
    %v174 = vld [vmem:[#allocation2 + $0x2c] sm:$0xf]
    %v175 = vld [vmem:[#allocation2 + $0x30] sm:$0xf]
    %v176 = vld [vmem:[#allocation2 + $0x34] sm:$0xf]
    %v177 = vld [vmem:[#allocation2 + $0x38] sm:$0xf]
    %v178 = vld [vmem:[#allocation2 + $0x3c] sm:$0xf]
    %v179 = vld [vmem:[#allocation2 + $0x40] sm:$0xf]
    %v180 = vld [vmem:[#allocation2 + $0x44] sm:$0xf]
    %v181 = vld [vmem:[#allocation2 + $0x48] sm:$0xf]
    %v182 = vld [vmem:[#allocation2 + $0x4c] sm:$0xf]
    %v183 = vld [vmem:[#allocation2 + $0x50] sm:$0xf]
    %v184 = vld [vmem:[#allocation2 + $0x54] sm:$0xf]
    %v185 = vld [vmem:[#allocation2 + $0x58] sm:$0xf]
    %v186 = vld [vmem:[#allocation2 + $0x5c] sm:$0xf]
    %v187 = vld [vmem:[#allocation2 + $0x60] sm:$0xf]
    %v188 = vld [vmem:[#allocation2 + $0x64] sm:$0xf]
    %v189 = vld [vmem:[#allocation2 + $0x68] sm:$0xf]
    %v190 = vld [vmem:[#allocation2 + $0x6c] sm:$0xf]
    %v191 = vld [vmem:[#allocation2 + $0x70] sm:$0xf]
    %v192 = vld [vmem:[#allocation2 + $0x74] sm:$0xf]
    %v193 = vld [vmem:[#allocation2 + $0x78] sm:$0xf]
    %v194 = vld [vmem:[#allocation2 + $0x7c] sm:$0xf]
    %v195 = vld [vmem:[#allocation5] sm:$0xf]
    %v196 = vld [vmem:[#allocation5 + $0x4] sm:$0xf]
    %v197 = vld [vmem:[#allocation5 + $0x8] sm:$0xf]
    %v198 = vld [vmem:[#allocation5 + $0xc] sm:$0xf]
    %v199 = vld [vmem:[#allocation5 + $0x10] sm:$0xf]
    %v200 = vld [vmem:[#allocation5 + $0x14] sm:$0xf]
    %v201 = vld [vmem:[#allocation5 + $0x18] sm:$0xf]
    %v202 = vld [vmem:[#allocation5 + $0x1c] sm:$0xf]
    %v203 = vld [vmem:[#allocation5 + $0x20] sm:$0xf]
    %v204 = vld [vmem:[#allocation5 + $0x24] sm:$0xf]
    %v205 = vld [vmem:[#allocation5 + $0x28] sm:$0xf]
    %v206 = vld [vmem:[#allocation5 + $0x2c] sm:$0xf]
    %v207 = vld [vmem:[#allocation5 + $0x30] sm:$0xf]
    %v208 = vld [vmem:[#allocation5 + $0x34] sm:$0xf]
    %v209 = vld [vmem:[#allocation5 + $0x38] sm:$0xf]
    %v210 = vld [vmem:[#allocation5 + $0x3c] sm:$0xf]
    %v243 = vunpack.c.l.b16 %v163
    %v244 = vunpack.c.l.b16 %v164
    %v245 = vunpack.c.l.b16 %v165
    %v246 = vunpack.c.l.b16 %v166
    %v247 = vunpack.c.l.b16 %v167
    %v248 = vunpack.c.l.b16 %v168
    %v249 = vunpack.c.l.b16 %v169
    %v250 = vunpack.c.l.b16 %v170
    %v251 = vunpack.c.l.b16 %v171
    %v252 = vunpack.c.l.b16 %v172
    %v253 = vunpack.c.l.b16 %v173
    %v254 = vunpack.c.l.b16 %v174
    %v255 = vunpack.c.l.b16 %v175
    %v256 = vunpack.c.l.b16 %v176
    %v257 = vunpack.c.l.b16 %v177
    %v258 = vunpack.c.l.b16 %v178
    %v259 = vunpack.c.l.b16 %v179
    %v260 = vunpack.c.l.b16 %v180
    %v261 = vunpack.c.l.b16 %v181
    %v262 = vunpack.c.l.b16 %v182
    %v263 = vunpack.c.l.b16 %v183
    %v264 = vunpack.c.l.b16 %v184
    %v265 = vunpack.c.l.b16 %v185
    %v266 = vunpack.c.l.b16 %v186
    %v267 = vunpack.c.l.b16 %v187
    %v268 = vunpack.c.l.b16 %v188
    %v269 = vunpack.c.l.b16 %v189
    %v270 = vunpack.c.l.b16 %v190
    %v271 = vunpack.c.l.b16 %v191
    %v272 = vunpack.c.l.b16 %v192
    %v273 = vunpack.c.l.b16 %v193
    %v274 = vunpack.c.l.b16 %v194
    %v275 = vpack.c.b16 %v244, %v243
    %v276 = vpack.c.b16 %v246, %v245
    %v277 = vpack.c.b16 %v248, %v247
    %v278 = vpack.c.b16 %v250, %v249
    %v279 = vpack.c.b16 %v252, %v251
    %v280 = vpack.c.b16 %v254, %v253
    %v281 = vpack.c.b16 %v256, %v255
    %v282 = vpack.c.b16 %v258, %v257
    %v283 = vpack.c.b16 %v260, %v259
    %v284 = vpack.c.b16 %v262, %v261
    %v285 = vpack.c.b16 %v264, %v263
    %v286 = vpack.c.b16 %v266, %v265
    %v287 = vpack.c.b16 %v268, %v267
    %v288 = vpack.c.b16 %v270, %v269
    %v289 = vpack.c.b16 %v272, %v271
    %v290 = vpack.c.b16 %v274, %v273
    %v323 = vunpack.c.l.b16 %v195
    %v324 = vunpack.c.l.b16 %v196
    %v325 = vunpack.c.l.b16 %v197
    %v326 = vunpack.c.l.b16 %v198
    %v327 = vunpack.c.l.b16 %v199
    %v328 = vunpack.c.l.b16 %v200
    %v329 = vunpack.c.l.b16 %v201
    %v330 = vunpack.c.l.b16 %v202
    %v331 = vunpack.c.l.b16 %v203
    %v332 = vunpack.c.l.b16 %v204
    %v333 = vunpack.c.l.b16 %v205
    %v334 = vunpack.c.l.b16 %v206
    %v335 = vunpack.c.l.b16 %v207
    %v336 = vunpack.c.l.b16 %v208
    %v337 = vunpack.c.l.b16 %v209
    %v338 = vunpack.c.l.b16 %v210
    %v339 = vpack.c.b16 %v324, %v323
    %v340 = vpack.c.b16 %v326, %v325
    %v341 = vpack.c.b16 %v328, %v327
    %v342 = vpack.c.b16 %v330, %v329
    %v343 = vpack.c.b16 %v332, %v331
    %v344 = vpack.c.b16 %v334, %v333
    %v345 = vpack.c.b16 %v336, %v335
    %v346 = vpack.c.b16 %v338, %v337
    %355 = vmatpush.bf16.msra.mxu0 %v346
    %356 = vmatpush.bf16.msra.mxu0 %v345
    %357 = vmatpush.bf16.msra.mxu0 %v344
    %358 = vmatpush.bf16.msra.mxu0 %v343
    %359 = vmatpush.bf16.msra.mxu0 %v342
    %360 = vmatpush.bf16.msra.mxu0 %v341
    %361 = vmatpush.bf16.msra.mxu0 %v340
    %362 = vmatpush.bf16.msra.mxu0 %v339
    %363 = vmatmul.bf16.gmra.mxu0 %v275
    %v364 = vpop.f32.mrf.mxu0
    %v365 = vadd.f32 0.0, %v364
    %v366 = vpop.f32.mrf.mxu0
    %v367 = vadd.f32 0.0, %v366
    %368 = vmatmul.bf16.gmra.mxu0 %v276
    %v369 = vpop.f32.mrf.mxu0
    %v370 = vadd.f32 0.0, %v369
    %v371 = vpop.f32.mrf.mxu0
    %v372 = vadd.f32 0.0, %v371
    %373 = vmatmul.bf16.gmra.mxu0 %v277
    %v374 = vpop.f32.mrf.mxu0
    %v375 = vadd.f32 0.0, %v374
    %v376 = vpop.f32.mrf.mxu0
    %v377 = vadd.f32 0.0, %v376
    %378 = vmatmul.bf16.gmra.mxu0 %v278
    %v379 = vpop.f32.mrf.mxu0
    %v380 = vadd.f32 0.0, %v379
    %v381 = vpop.f32.mrf.mxu0
    %v382 = vadd.f32 0.0, %v381
    %383 = vmatmul.bf16.gmra.mxu0 %v279
    %v384 = vpop.f32.mrf.mxu0
    %v385 = vadd.f32 0.0, %v384
    %v386 = vpop.f32.mrf.mxu0
    %v387 = vadd.f32 0.0, %v386
    %388 = vmatmul.bf16.gmra.mxu0 %v280
    %v389 = vpop.f32.mrf.mxu0
    %v390 = vadd.f32 0.0, %v389
    %v391 = vpop.f32.mrf.mxu0
    %v392 = vadd.f32 0.0, %v391
    %393 = vmatmul.bf16.gmra.mxu0 %v281
    %v394 = vpop.f32.mrf.mxu0
    %v395 = vadd.f32 0.0, %v394
    %v396 = vpop.f32.mrf.mxu0
    %v397 = vadd.f32 0.0, %v396
    %398 = vmatmul.bf16.gmra.mxu0 %v282
    %v399 = vpop.f32.mrf.mxu0
    %v400 = vadd.f32 0.0, %v399
    %v401 = vpop.f32.mrf.mxu0
    %v402 = vadd.f32 0.0, %v401
    %403 = vmatmul.bf16.gmra.mxu0 %v283
    %v404 = vpop.f32.mrf.mxu0
    %v405 = vadd.f32 0.0, %v404
    %v406 = vpop.f32.mrf.mxu0
    %v407 = vadd.f32 0.0, %v406
    %408 = vmatmul.bf16.gmra.mxu0 %v284
    %v409 = vpop.f32.mrf.mxu0
    %v410 = vadd.f32 0.0, %v409
    %v411 = vpop.f32.mrf.mxu0
    %v412 = vadd.f32 0.0, %v411
    %413 = vmatmul.bf16.gmra.mxu0 %v285
    %v414 = vpop.f32.mrf.mxu0
    %v415 = vadd.f32 0.0, %v414
    %v416 = vpop.f32.mrf.mxu0
    %v417 = vadd.f32 0.0, %v416
    %418 = vmatmul.bf16.gmra.mxu0 %v286
    %v419 = vpop.f32.mrf.mxu0
    %v420 = vadd.f32 0.0, %v419
    %v421 = vpop.f32.mrf.mxu0
    %v422 = vadd.f32 0.0, %v421
    %423 = vmatmul.bf16.gmra.mxu0 %v287
    %v424 = vpop.f32.mrf.mxu0
    %v425 = vadd.f32 0.0, %v424
    %v426 = vpop.f32.mrf.mxu0
    %v427 = vadd.f32 0.0, %v426
    %428 = vmatmul.bf16.gmra.mxu0 %v288
    %v429 = vpop.f32.mrf.mxu0
    %v430 = vadd.f32 0.0, %v429
    %v431 = vpop.f32.mrf.mxu0
    %v432 = vadd.f32 0.0, %v431
    %433 = vmatmul.bf16.gmra.mxu0 %v289
    %v434 = vpop.f32.mrf.mxu0
    %v435 = vadd.f32 0.0, %v434
    %v436 = vpop.f32.mrf.mxu0
    %v437 = vadd.f32 0.0, %v436
    %438 = vmatmul.bf16.gmra.mxu0 %v290
    %v439 = vpop.f32.mrf.mxu0
    %v440 = vadd.f32 0.0, %v439
    %v441 = vpop.f32.mrf.mxu0
    %v442 = vadd.f32 0.0, %v441
    %443 = vdwg.mxu0
    %445 = vset.pattern.permute.xlu0 0
    %446 = vperm.xlu0 %445, %v131
    %v447 = vpop.permute.xlu0 %446
    %450 = vset.pattern.permute.xlu0 0
    %451 = vperm.xlu0 %450, %v132
    %v452 = vpop.permute.xlu0 %451
    %455 = vset.pattern.permute.xlu0 0
    %456 = vperm.xlu0 %455, %v133
    %v457 = vpop.permute.xlu0 %456
    %460 = vset.pattern.permute.xlu0 0
    %461 = vperm.xlu0 %460, %v134
    %v462 = vpop.permute.xlu0 %461
    %465 = vset.pattern.permute.xlu0 0
    %466 = vperm.xlu0 %465, %v135
    %v467 = vpop.permute.xlu0 %466
    %470 = vset.pattern.permute.xlu0 0
    %471 = vperm.xlu0 %470, %v136
    %v472 = vpop.permute.xlu0 %471
    %475 = vset.pattern.permute.xlu0 0
    %476 = vperm.xlu0 %475, %v137
    %v477 = vpop.permute.xlu0 %476
    %480 = vset.pattern.permute.xlu0 0
    %481 = vperm.xlu0 %480, %v138
    %v482 = vpop.permute.xlu0 %481
    %485 = vset.pattern.permute.xlu0 0
    %486 = vperm.xlu0 %485, %v139
    %v487 = vpop.permute.xlu0 %486
    %490 = vset.pattern.permute.xlu0 0
    %491 = vperm.xlu0 %490, %v140
    %v492 = vpop.permute.xlu0 %491
    %495 = vset.pattern.permute.xlu0 0
    %496 = vperm.xlu0 %495, %v141
    %v497 = vpop.permute.xlu0 %496
    %500 = vset.pattern.permute.xlu0 0
    %501 = vperm.xlu0 %500, %v142
    %v502 = vpop.permute.xlu0 %501
    %505 = vset.pattern.permute.xlu0 0
    %506 = vperm.xlu0 %505, %v143
    %v507 = vpop.permute.xlu0 %506
    %510 = vset.pattern.permute.xlu0 0
    %511 = vperm.xlu0 %510, %v144
    %v512 = vpop.permute.xlu0 %511
    %515 = vset.pattern.permute.xlu0 0
    %516 = vperm.xlu0 %515, %v145
    %v517 = vpop.permute.xlu0 %516
    %520 = vset.pattern.permute.xlu0 0
    %521 = vperm.xlu0 %520, %v146
    %v522 = vpop.permute.xlu0 %521
    %525 = vset.pattern.permute.xlu0 0
    %526 = vperm.xlu0 %525, %v147
    %v527 = vpop.permute.xlu0 %526
    %530 = vset.pattern.permute.xlu0 0
    %531 = vperm.xlu0 %530, %v148
    %v532 = vpop.permute.xlu0 %531
    %535 = vset.pattern.permute.xlu0 0
    %536 = vperm.xlu0 %535, %v149
    %v537 = vpop.permute.xlu0 %536
    %540 = vset.pattern.permute.xlu0 0
    %541 = vperm.xlu0 %540, %v150
    %v542 = vpop.permute.xlu0 %541
    %545 = vset.pattern.permute.xlu0 0
    %546 = vperm.xlu0 %545, %v151
    %v547 = vpop.permute.xlu0 %546
    %550 = vset.pattern.permute.xlu0 0
    %551 = vperm.xlu0 %550, %v152
    %v552 = vpop.permute.xlu0 %551
    %555 = vset.pattern.permute.xlu0 0
    %556 = vperm.xlu0 %555, %v153
    %v557 = vpop.permute.xlu0 %556
    %560 = vset.pattern.permute.xlu0 0
    %561 = vperm.xlu0 %560, %v154
    %v562 = vpop.permute.xlu0 %561
    %565 = vset.pattern.permute.xlu0 0
    %566 = vperm.xlu0 %565, %v155
    %v567 = vpop.permute.xlu0 %566
    %570 = vset.pattern.permute.xlu0 0
    %571 = vperm.xlu0 %570, %v156
    %v572 = vpop.permute.xlu0 %571
    %575 = vset.pattern.permute.xlu0 0
    %576 = vperm.xlu0 %575, %v157
    %v577 = vpop.permute.xlu0 %576
    %580 = vset.pattern.permute.xlu0 0
    %581 = vperm.xlu0 %580, %v158
    %v582 = vpop.permute.xlu0 %581
    %585 = vset.pattern.permute.xlu0 0
    %586 = vperm.xlu0 %585, %v159
    %v587 = vpop.permute.xlu0 %586
    %590 = vset.pattern.permute.xlu0 0
    %591 = vperm.xlu0 %590, %v160
    %v592 = vpop.permute.xlu0 %591
    %595 = vset.pattern.permute.xlu0 0
    %596 = vperm.xlu0 %595, %v161
    %v597 = vpop.permute.xlu0 %596
    %600 = vset.pattern.permute.xlu0 0
    %601 = vperm.xlu0 %600, %v162
    %v602 = vpop.permute.xlu0 %601
    %v604 = vmul.f32 %v365, %v447
    %v605 = vmul.f32 %v367, %v452
    %v606 = vmul.f32 %v370, %v457
    %v607 = vmul.f32 %v372, %v462
    %v608 = vmul.f32 %v375, %v467
    %v609 = vmul.f32 %v377, %v472
    %v610 = vmul.f32 %v380, %v477
    %v611 = vmul.f32 %v382, %v482
    %v612 = vmul.f32 %v385, %v487
    %v613 = vmul.f32 %v387, %v492
    %v614 = vmul.f32 %v390, %v497
    %v615 = vmul.f32 %v392, %v502
    %v616 = vmul.f32 %v395, %v507
    %v617 = vmul.f32 %v397, %v512
    %v618 = vmul.f32 %v400, %v517
    %v619 = vmul.f32 %v402, %v522
    %v620 = vmul.f32 %v405, %v527
    %v621 = vmul.f32 %v407, %v532
    %v622 = vmul.f32 %v410, %v537
    %v623 = vmul.f32 %v412, %v542
    %v624 = vmul.f32 %v415, %v547
    %v625 = vmul.f32 %v417, %v552
    %v626 = vmul.f32 %v420, %v557
    %v627 = vmul.f32 %v422, %v562
    %v628 = vmul.f32 %v425, %v567
    %v629 = vmul.f32 %v427, %v572
    %v630 = vmul.f32 %v430, %v577
    %v631 = vmul.f32 %v432, %v582
    %v632 = vmul.f32 %v435, %v587
    %v633 = vmul.f32 %v437, %v592
    %v634 = vmul.f32 %v440, %v597
    %v635 = vmul.f32 %v442, %v602
    %v636 = vpack.c.bf16 %v605, %v604
    %v637 = vpack.c.bf16 %v607, %v606
    %v638 = vpack.c.bf16 %v609, %v608
    %v639 = vpack.c.bf16 %v611, %v610
    %v640 = vpack.c.bf16 %v613, %v612
    %v641 = vpack.c.bf16 %v615, %v614
    %v642 = vpack.c.bf16 %v617, %v616
    %v643 = vpack.c.bf16 %v619, %v618
    %v644 = vpack.c.bf16 %v621, %v620
    %v645 = vpack.c.bf16 %v623, %v622
    %v646 = vpack.c.bf16 %v625, %v624
    %v647 = vpack.c.bf16 %v627, %v626
    %v648 = vpack.c.bf16 %v629, %v628
    %v649 = vpack.c.bf16 %v631, %v630
    %v650 = vpack.c.bf16 %v633, %v632
    %v651 = vpack.c.bf16 %v635, %v634
    %v684 = vunpack.c.l.b16 %v99
    %v685 = vunpack.c.h.b16 %v99
    %v686 = vunpack.c.l.b16 %v100
    %v687 = vunpack.c.h.b16 %v100
    %v688 = vunpack.c.l.b16 %v101
    %v689 = vunpack.c.h.b16 %v101
    %v690 = vunpack.c.l.b16 %v102
    %v691 = vunpack.c.h.b16 %v102
    %v692 = vunpack.c.l.b16 %v103
    %v693 = vunpack.c.h.b16 %v103
    %v694 = vunpack.c.l.b16 %v104
    %v695 = vunpack.c.h.b16 %v104
    %v696 = vunpack.c.l.b16 %v105
    %v697 = vunpack.c.h.b16 %v105
    %v698 = vunpack.c.l.b16 %v106
    %v699 = vunpack.c.h.b16 %v106
    %v700 = vunpack.c.l.b16 %v107
    %v701 = vunpack.c.h.b16 %v107
    %v702 = vunpack.c.l.b16 %v108
    %v703 = vunpack.c.h.b16 %v108
    %v704 = vunpack.c.l.b16 %v109
    %v705 = vunpack.c.h.b16 %v109
    %v706 = vunpack.c.l.b16 %v110
    %v707 = vunpack.c.h.b16 %v110
    %v708 = vunpack.c.l.b16 %v111
    %v709 = vunpack.c.h.b16 %v111
    %v710 = vunpack.c.l.b16 %v112
    %v711 = vunpack.c.h.b16 %v112
    %v712 = vunpack.c.l.b16 %v113
    %v713 = vunpack.c.h.b16 %v113
    %v714 = vunpack.c.l.b16 %v114
    %v715 = vunpack.c.h.b16 %v114
    %v716 = vunpack.c.l.b16 %v115
    %v717 = vunpack.c.h.b16 %v115
    %v718 = vunpack.c.l.b16 %v116
    %v719 = vunpack.c.h.b16 %v116
    %v720 = vunpack.c.l.b16 %v117
    %v721 = vunpack.c.h.b16 %v117
    %v722 = vunpack.c.l.b16 %v118
    %v723 = vunpack.c.h.b16 %v118
    %v724 = vunpack.c.l.b16 %v119
    %v725 = vunpack.c.h.b16 %v119
    %v726 = vunpack.c.l.b16 %v120
    %v727 = vunpack.c.h.b16 %v120
    %v728 = vunpack.c.l.b16 %v121
    %v729 = vunpack.c.h.b16 %v121
    %v730 = vunpack.c.l.b16 %v122
    %v731 = vunpack.c.h.b16 %v122
    %v732 = vunpack.c.l.b16 %v123
    %v733 = vunpack.c.h.b16 %v123
    %v734 = vunpack.c.l.b16 %v124
    %v735 = vunpack.c.h.b16 %v124
    %v736 = vunpack.c.l.b16 %v125
    %v737 = vunpack.c.h.b16 %v125
    %v738 = vunpack.c.l.b16 %v126
    %v739 = vunpack.c.h.b16 %v126
    %v740 = vunpack.c.l.b16 %v127
    %v741 = vunpack.c.h.b16 %v127
    %v742 = vunpack.c.l.b16 %v128
    %v743 = vunpack.c.h.b16 %v128
    %v744 = vunpack.c.l.b16 %v129
    %v745 = vunpack.c.h.b16 %v129
    %v746 = vunpack.c.l.b16 %v130
    %v747 = vunpack.c.h.b16 %v130
    %v748 = vpack.c.b16 %v686, %v684
    %v749 = vpack.c.b16 %v687, %v685
    %v750 = vpack.c.b16 %v690, %v688
    %v751 = vpack.c.b16 %v691, %v689
    %v752 = vpack.c.b16 %v694, %v692
    %v753 = vpack.c.b16 %v695, %v693
    %v754 = vpack.c.b16 %v698, %v696
    %v755 = vpack.c.b16 %v699, %v697
    %v756 = vpack.c.b16 %v702, %v700
    %v757 = vpack.c.b16 %v703, %v701
    %v758 = vpack.c.b16 %v706, %v704
    %v759 = vpack.c.b16 %v707, %v705
    %v760 = vpack.c.b16 %v710, %v708
    %v761 = vpack.c.b16 %v711, %v709
    %v762 = vpack.c.b16 %v714, %v712
    %v763 = vpack.c.b16 %v715, %v713
    %v764 = vpack.c.b16 %v718, %v716
    %v765 = vpack.c.b16 %v719, %v717
    %v766 = vpack.c.b16 %v722, %v720
    %v767 = vpack.c.b16 %v723, %v721
    %v768 = vpack.c.b16 %v726, %v724
    %v769 = vpack.c.b16 %v727, %v725
    %v770 = vpack.c.b16 %v730, %v728
    %v771 = vpack.c.b16 %v731, %v729
    %v772 = vpack.c.b16 %v734, %v732
    %v773 = vpack.c.b16 %v735, %v733
    %v774 = vpack.c.b16 %v738, %v736
    %v775 = vpack.c.b16 %v739, %v737
    %v776 = vpack.c.b16 %v742, %v740
    %v777 = vpack.c.b16 %v743, %v741
    %v778 = vpack.c.b16 %v746, %v744
    %v779 = vpack.c.b16 %v747, %v745
    %812 = vmatpush.bf16.msra.mxu0 %v643
    %813 = vmatpush.bf16.msra.mxu0 %v642
    %814 = vmatpush.bf16.msra.mxu0 %v641
    %815 = vmatpush.bf16.msra.mxu0 %v640
    %816 = vmatpush.bf16.msra.mxu0 %v639
    %817 = vmatpush.bf16.msra.mxu0 %v638
    %818 = vmatpush.bf16.msra.mxu0 %v637
    %819 = vmatpush.bf16.msra.mxu0 %v636
    %820 = vmatmul.bf16.gmra.mxu0 %v748
    %v821 = vpop.f32.mrf.mxu0
    %v822 = vadd.f32 0.0, %v821
    %v823 = vpop.f32.mrf.mxu0
    %v824 = vadd.f32 0.0, %v823
    %825 = vmatmul.bf16.gmra.mxu0 %v750
    %v826 = vpop.f32.mrf.mxu0
    %v827 = vadd.f32 0.0, %v826
    %v828 = vpop.f32.mrf.mxu0
    %v829 = vadd.f32 0.0, %v828
    %830 = vmatmul.bf16.gmra.mxu0 %v752
    %v831 = vpop.f32.mrf.mxu0
    %v832 = vadd.f32 0.0, %v831
    %v833 = vpop.f32.mrf.mxu0
    %v834 = vadd.f32 0.0, %v833
    %835 = vmatmul.bf16.gmra.mxu0 %v754
    %v836 = vpop.f32.mrf.mxu0
    %v837 = vadd.f32 0.0, %v836
    %v838 = vpop.f32.mrf.mxu0
    %v839 = vadd.f32 0.0, %v838
    %840 = vmatmul.bf16.gmra.mxu0 %v756
    %v841 = vpop.f32.mrf.mxu0
    %v842 = vadd.f32 0.0, %v841
    %v843 = vpop.f32.mrf.mxu0
    %v844 = vadd.f32 0.0, %v843
    %845 = vmatmul.bf16.gmra.mxu0 %v758
    %v846 = vpop.f32.mrf.mxu0
    %v847 = vadd.f32 0.0, %v846
    %v848 = vpop.f32.mrf.mxu0
    %v849 = vadd.f32 0.0, %v848
    %850 = vmatmul.bf16.gmra.mxu0 %v760
    %v851 = vpop.f32.mrf.mxu0
    %v852 = vadd.f32 0.0, %v851
    %v853 = vpop.f32.mrf.mxu0
    %v854 = vadd.f32 0.0, %v853
    %855 = vmatmul.bf16.gmra.mxu0 %v762
    %v856 = vpop.f32.mrf.mxu0
    %v857 = vadd.f32 0.0, %v856
    %v858 = vpop.f32.mrf.mxu0
    %v859 = vadd.f32 0.0, %v858
    %860 = vmatmul.bf16.gmra.mxu0 %v764
    %v861 = vpop.f32.mrf.mxu0
    %v862 = vadd.f32 0.0, %v861
    %v863 = vpop.f32.mrf.mxu0
    %v864 = vadd.f32 0.0, %v863
    %865 = vmatmul.bf16.gmra.mxu0 %v766
    %v866 = vpop.f32.mrf.mxu0
    %v867 = vadd.f32 0.0, %v866
    %v868 = vpop.f32.mrf.mxu0
    %v869 = vadd.f32 0.0, %v868
    %870 = vmatmul.bf16.gmra.mxu0 %v768
    %v871 = vpop.f32.mrf.mxu0
    %v872 = vadd.f32 0.0, %v871
    %v873 = vpop.f32.mrf.mxu0
    %v874 = vadd.f32 0.0, %v873
    %875 = vmatmul.bf16.gmra.mxu0 %v770
    %v876 = vpop.f32.mrf.mxu0
    %v877 = vadd.f32 0.0, %v876
    %v878 = vpop.f32.mrf.mxu0
    %v879 = vadd.f32 0.0, %v878
    %880 = vmatmul.bf16.gmra.mxu0 %v772
    %v881 = vpop.f32.mrf.mxu0
    %v882 = vadd.f32 0.0, %v881
    %v883 = vpop.f32.mrf.mxu0
    %v884 = vadd.f32 0.0, %v883
    %885 = vmatmul.bf16.gmra.mxu0 %v774
    %v886 = vpop.f32.mrf.mxu0
    %v887 = vadd.f32 0.0, %v886
    %v888 = vpop.f32.mrf.mxu0
    %v889 = vadd.f32 0.0, %v888
    %890 = vmatmul.bf16.gmra.mxu0 %v776
    %v891 = vpop.f32.mrf.mxu0
    %v892 = vadd.f32 0.0, %v891
    %v893 = vpop.f32.mrf.mxu0
    %v894 = vadd.f32 0.0, %v893
    %895 = vmatmul.bf16.gmra.mxu0 %v778
    %v896 = vpop.f32.mrf.mxu0
    %v897 = vadd.f32 0.0, %v896
    %v898 = vpop.f32.mrf.mxu0
    %v899 = vadd.f32 0.0, %v898
    %900 = vdwg.mxu0
    %901 = vmatpush.bf16.msra.mxu0 %v651
    %902 = vmatpush.bf16.msra.mxu0 %v650
    %903 = vmatpush.bf16.msra.mxu0 %v649
    %904 = vmatpush.bf16.msra.mxu0 %v648
    %905 = vmatpush.bf16.msra.mxu0 %v647
    %906 = vmatpush.bf16.msra.mxu0 %v646
    %907 = vmatpush.bf16.msra.mxu0 %v645
    %908 = vmatpush.bf16.msra.mxu0 %v644
    %909 = vmatmul.bf16.gmra.mxu0 %v749
    %v910 = vpop.f32.mrf.mxu0
    %v911 = vadd.f32 %v822, %v910
    %v912 = vpop.f32.mrf.mxu0
    %v913 = vadd.f32 %v824, %v912
    %914 = vmatmul.bf16.gmra.mxu0 %v751
    %v915 = vpop.f32.mrf.mxu0
    %v916 = vadd.f32 %v827, %v915
    %v917 = vpop.f32.mrf.mxu0
    %v918 = vadd.f32 %v829, %v917
    %919 = vmatmul.bf16.gmra.mxu0 %v753
    %v920 = vpop.f32.mrf.mxu0
    %v921 = vadd.f32 %v832, %v920
    %v922 = vpop.f32.mrf.mxu0
    %v923 = vadd.f32 %v834, %v922
    %924 = vmatmul.bf16.gmra.mxu0 %v755
    %v925 = vpop.f32.mrf.mxu0
    %v926 = vadd.f32 %v837, %v925
    %v927 = vpop.f32.mrf.mxu0
    %v928 = vadd.f32 %v839, %v927
    %929 = vmatmul.bf16.gmra.mxu0 %v757
    %v930 = vpop.f32.mrf.mxu0
    %v931 = vadd.f32 %v842, %v930
    %v932 = vpop.f32.mrf.mxu0
    %v933 = vadd.f32 %v844, %v932
    %934 = vmatmul.bf16.gmra.mxu0 %v759
    %v935 = vpop.f32.mrf.mxu0
    %v936 = vadd.f32 %v847, %v935
    %v937 = vpop.f32.mrf.mxu0
    %v938 = vadd.f32 %v849, %v937
    %939 = vmatmul.bf16.gmra.mxu0 %v761
    %v940 = vpop.f32.mrf.mxu0
    %v941 = vadd.f32 %v852, %v940
    %v942 = vpop.f32.mrf.mxu0
    %v943 = vadd.f32 %v854, %v942
    %944 = vmatmul.bf16.gmra.mxu0 %v763
    %v945 = vpop.f32.mrf.mxu0
    %v946 = vadd.f32 %v857, %v945
    %v947 = vpop.f32.mrf.mxu0
    %v948 = vadd.f32 %v859, %v947
    %949 = vmatmul.bf16.gmra.mxu0 %v765
    %v950 = vpop.f32.mrf.mxu0
    %v951 = vadd.f32 %v862, %v950
    %v952 = vpop.f32.mrf.mxu0
    %v953 = vadd.f32 %v864, %v952
    %954 = vmatmul.bf16.gmra.mxu0 %v767
    %v955 = vpop.f32.mrf.mxu0
    %v956 = vadd.f32 %v867, %v955
    %v957 = vpop.f32.mrf.mxu0
    %v958 = vadd.f32 %v869, %v957
    %959 = vmatmul.bf16.gmra.mxu0 %v769
    %v960 = vpop.f32.mrf.mxu0
    %v961 = vadd.f32 %v872, %v960
    %v962 = vpop.f32.mrf.mxu0
    %v963 = vadd.f32 %v874, %v962
    %964 = vmatmul.bf16.gmra.mxu0 %v771
    %v965 = vpop.f32.mrf.mxu0
    %v966 = vadd.f32 %v877, %v965
    %v967 = vpop.f32.mrf.mxu0
    %v968 = vadd.f32 %v879, %v967
    %969 = vmatmul.bf16.gmra.mxu0 %v773
    %v970 = vpop.f32.mrf.mxu0
    %v971 = vadd.f32 %v882, %v970
    %v972 = vpop.f32.mrf.mxu0
    %v973 = vadd.f32 %v884, %v972
    %974 = vmatmul.bf16.gmra.mxu0 %v775
    %v975 = vpop.f32.mrf.mxu0
    %v976 = vadd.f32 %v887, %v975
    %v977 = vpop.f32.mrf.mxu0
    %v978 = vadd.f32 %v889, %v977
    %979 = vmatmul.bf16.gmra.mxu0 %v777
    %v980 = vpop.f32.mrf.mxu0
    %v981 = vadd.f32 %v892, %v980
    %v982 = vpop.f32.mrf.mxu0
    %v983 = vadd.f32 %v894, %v982
    %984 = vmatmul.bf16.gmra.mxu0 %v779
    %v985 = vpop.f32.mrf.mxu0
    %v986 = vadd.f32 %v897, %v985
    %v987 = vpop.f32.mrf.mxu0
    %v988 = vadd.f32 %v899, %v987
    %989 = vdwg.mxu0
    %v990 = vmul.f32 %v911, %v447
    %v991 = vmul.f32 %v913, %v452
    %v992 = vmul.f32 %v916, %v457
    %v993 = vmul.f32 %v918, %v462
    %v994 = vmul.f32 %v921, %v467
    %v995 = vmul.f32 %v923, %v472
    %v996 = vmul.f32 %v926, %v477
    %v997 = vmul.f32 %v928, %v482
    %v998 = vmul.f32 %v931, %v487
    %v999 = vmul.f32 %v933, %v492
    %v1000 = vmul.f32 %v936, %v497
    %v1001 = vmul.f32 %v938, %v502
    %v1002 = vmul.f32 %v941, %v507
    %v1003 = vmul.f32 %v943, %v512
    %v1004 = vmul.f32 %v946, %v517
    %v1005 = vmul.f32 %v948, %v522
    %v1006 = vmul.f32 %v951, %v527
    %v1007 = vmul.f32 %v953, %v532
    %v1008 = vmul.f32 %v956, %v537
    %v1009 = vmul.f32 %v958, %v542
    %v1010 = vmul.f32 %v961, %v547
    %v1011 = vmul.f32 %v963, %v552
    %v1012 = vmul.f32 %v966, %v557
    %v1013 = vmul.f32 %v968, %v562
    %v1014 = vmul.f32 %v971, %v567
    %v1015 = vmul.f32 %v973, %v572
    %v1016 = vmul.f32 %v976, %v577
    %v1017 = vmul.f32 %v978, %v582
    %v1018 = vmul.f32 %v981, %v587
    %v1019 = vmul.f32 %v983, %v592
    %v1020 = vmul.f32 %v986, %v597
    %v1021 = vmul.f32 %v988, %v602
    %v1022 = vld [vmem:[%s4] sm:$0x1]
    %v1024 = vperm.slane %v1022, 0
    %v1026 = vmul.f32 %v990, %v1024
    %v1027 = vmul.f32 %v991, %v1024
    %v1028 = vmul.f32 %v992, %v1024
    %v1029 = vmul.f32 %v993, %v1024
    %v1030 = vmul.f32 %v994, %v1024
    %v1031 = vmul.f32 %v995, %v1024
    %v1032 = vmul.f32 %v996, %v1024
    %v1033 = vmul.f32 %v997, %v1024
    %v1034 = vmul.f32 %v998, %v1024
    %v1035 = vmul.f32 %v999, %v1024
    %v1036 = vmul.f32 %v1000, %v1024
    %v1037 = vmul.f32 %v1001, %v1024
    %v1038 = vmul.f32 %v1002, %v1024
    %v1039 = vmul.f32 %v1003, %v1024
    %v1040 = vmul.f32 %v1004, %v1024
    %v1041 = vmul.f32 %v1005, %v1024
    %v1042 = vmul.f32 %v1006, %v1024
    %v1043 = vmul.f32 %v1007, %v1024
    %v1044 = vmul.f32 %v1008, %v1024
    %v1045 = vmul.f32 %v1009, %v1024
    %v1046 = vmul.f32 %v1010, %v1024
    %v1047 = vmul.f32 %v1011, %v1024
    %v1048 = vmul.f32 %v1012, %v1024
    %v1049 = vmul.f32 %v1013, %v1024
    %v1050 = vmul.f32 %v1014, %v1024
    %v1051 = vmul.f32 %v1015, %v1024
    %v1052 = vmul.f32 %v1016, %v1024
    %v1053 = vmul.f32 %v1017, %v1024
    %v1054 = vmul.f32 %v1018, %v1024
    %v1055 = vmul.f32 %v1019, %v1024
    %v1056 = vmul.f32 %v1020, %v1024
    %v1057 = vmul.f32 %v1021, %v1024
    %v1058 = vld [vmem:[%s5] sm:$0x1]
    %v1060 = vperm.slane %v1058, 0
    %v1062 = vadd.f32 %v1026, %v1060
    %v1063 = vadd.f32 %v1027, %v1060
    %v1064 = vadd.f32 %v1028, %v1060
    %v1065 = vadd.f32 %v1029, %v1060
    %v1066 = vadd.f32 %v1030, %v1060
    %v1067 = vadd.f32 %v1031, %v1060
    %v1068 = vadd.f32 %v1032, %v1060
    %v1069 = vadd.f32 %v1033, %v1060
    %v1070 = vadd.f32 %v1034, %v1060
    %v1071 = vadd.f32 %v1035, %v1060
    %v1072 = vadd.f32 %v1036, %v1060
    %v1073 = vadd.f32 %v1037, %v1060
    %v1074 = vadd.f32 %v1038, %v1060
    %v1075 = vadd.f32 %v1039, %v1060
    %v1076 = vadd.f32 %v1040, %v1060
    %v1077 = vadd.f32 %v1041, %v1060
    %v1078 = vadd.f32 %v1042, %v1060
    %v1079 = vadd.f32 %v1043, %v1060
    %v1080 = vadd.f32 %v1044, %v1060
    %v1081 = vadd.f32 %v1045, %v1060
    %v1082 = vadd.f32 %v1046, %v1060
    %v1083 = vadd.f32 %v1047, %v1060
    %v1084 = vadd.f32 %v1048, %v1060
    %v1085 = vadd.f32 %v1049, %v1060
    %v1086 = vadd.f32 %v1050, %v1060
    %v1087 = vadd.f32 %v1051, %v1060
    %v1088 = vadd.f32 %v1052, %v1060
    %v1089 = vadd.f32 %v1053, %v1060
    %v1090 = vadd.f32 %v1054, %v1060
    %v1091 = vadd.f32 %v1055, %v1060
    %v1092 = vadd.f32 %v1056, %v1060
    %v1093 = vadd.f32 %v1057, %v1060
    %v1094 = vmax.f32 %v1062, 0.0
    %v1095 = vmax.f32 %v1063, 0.0
    %v1096 = vmax.f32 %v1064, 0.0
    %v1097 = vmax.f32 %v1065, 0.0
    %v1098 = vmax.f32 %v1066, 0.0
    %v1099 = vmax.f32 %v1067, 0.0
    %v1100 = vmax.f32 %v1068, 0.0
    %v1101 = vmax.f32 %v1069, 0.0
    %v1102 = vmax.f32 %v1070, 0.0
    %v1103 = vmax.f32 %v1071, 0.0
    %v1104 = vmax.f32 %v1072, 0.0
    %v1105 = vmax.f32 %v1073, 0.0
    %v1106 = vmax.f32 %v1074, 0.0
    %v1107 = vmax.f32 %v1075, 0.0
    %v1108 = vmax.f32 %v1076, 0.0
    %v1109 = vmax.f32 %v1077, 0.0
    %v1110 = vmax.f32 %v1078, 0.0
    %v1111 = vmax.f32 %v1079, 0.0
    %v1112 = vmax.f32 %v1080, 0.0
    %v1113 = vmax.f32 %v1081, 0.0
    %v1114 = vmax.f32 %v1082, 0.0
    %v1115 = vmax.f32 %v1083, 0.0
    %v1116 = vmax.f32 %v1084, 0.0
    %v1117 = vmax.f32 %v1085, 0.0
    %v1118 = vmax.f32 %v1086, 0.0
    %v1119 = vmax.f32 %v1087, 0.0
    %v1120 = vmax.f32 %v1088, 0.0
    %v1121 = vmax.f32 %v1089, 0.0
    %v1122 = vmax.f32 %v1090, 0.0
    %v1123 = vmax.f32 %v1091, 0.0
    %v1124 = vmax.f32 %v1092, 0.0
    %v1125 = vmax.f32 %v1093, 0.0
    %v1126 = vpack.c.bf16 %v1095, %v1094
    %v1127 = vpack.c.bf16 %v1097, %v1096
    %v1128 = vpack.c.bf16 %v1099, %v1098
    %v1129 = vpack.c.bf16 %v1101, %v1100
    %v1130 = vpack.c.bf16 %v1103, %v1102
    %v1131 = vpack.c.bf16 %v1105, %v1104
    %v1132 = vpack.c.bf16 %v1107, %v1106
    %v1133 = vpack.c.bf16 %v1109, %v1108
    %v1134 = vpack.c.bf16 %v1111, %v1110
    %v1135 = vpack.c.bf16 %v1113, %v1112
    %v1136 = vpack.c.bf16 %v1115, %v1114
    %v1137 = vpack.c.bf16 %v1117, %v1116
    %v1138 = vpack.c.bf16 %v1119, %v1118
    %v1139 = vpack.c.bf16 %v1121, %v1120
    %v1140 = vpack.c.bf16 %v1123, %v1122
    %v1141 = vpack.c.bf16 %v1125, %v1124
    %v1142 = vld [vmem:[#allocation7] sm:$0xf]
    %v1143 = vld [vmem:[#allocation7 + $0x4] sm:$0xf]
    %v1144 = vld [vmem:[#allocation7 + $0x8] sm:$0xf]
    %v1145 = vld [vmem:[#allocation7 + $0xc] sm:$0xf]
    %v1146 = vld [vmem:[#allocation7 + $0x10] sm:$0xf]
    %v1147 = vld [vmem:[#allocation7 + $0x14] sm:$0xf]
    %v1148 = vld [vmem:[#allocation7 + $0x18] sm:$0xf]
    %v1149 = vld [vmem:[#allocation7 + $0x1c] sm:$0xf]
    %v1150 = vld [vmem:[#allocation7 + $0x20] sm:$0xf]
    %v1151 = vld [vmem:[#allocation7 + $0x24] sm:$0xf]
    %v1152 = vld [vmem:[#allocation7 + $0x28] sm:$0xf]
    %v1153 = vld [vmem:[#allocation7 + $0x2c] sm:$0xf]
    %v1154 = vld [vmem:[#allocation7 + $0x30] sm:$0xf]
    %v1155 = vld [vmem:[#allocation7 + $0x34] sm:$0xf]
    %v1156 = vld [vmem:[#allocation7 + $0x38] sm:$0xf]
    %v1157 = vld [vmem:[#allocation7 + $0x3c] sm:$0xf]
    %v1174 = vunpack.c.l.b16 %v1142
    %v1175 = vunpack.c.l.b16 %v1143
    %v1176 = vunpack.c.l.b16 %v1144
    %v1177 = vunpack.c.l.b16 %v1145
    %v1178 = vunpack.c.l.b16 %v1146
    %v1179 = vunpack.c.l.b16 %v1147
    %v1180 = vunpack.c.l.b16 %v1148
    %v1181 = vunpack.c.l.b16 %v1149
    %v1182 = vunpack.c.l.b16 %v1150
    %v1183 = vunpack.c.l.b16 %v1151
    %v1184 = vunpack.c.l.b16 %v1152
    %v1185 = vunpack.c.l.b16 %v1153
    %v1186 = vunpack.c.l.b16 %v1154
    %v1187 = vunpack.c.l.b16 %v1155
    %v1188 = vunpack.c.l.b16 %v1156
    %v1189 = vunpack.c.l.b16 %v1157
    %v1190 = vpack.c.b16 %v1175, %v1174
    %v1191 = vpack.c.b16 %v1177, %v1176
    %v1192 = vpack.c.b16 %v1179, %v1178
    %v1193 = vpack.c.b16 %v1181, %v1180
    %v1194 = vpack.c.b16 %v1183, %v1182
    %v1195 = vpack.c.b16 %v1185, %v1184
    %v1196 = vpack.c.b16 %v1187, %v1186
    %v1197 = vpack.c.b16 %v1189, %v1188
    %1206 = vmatpush.bf16.msra.mxu0 %v1197
    %1207 = vmatpush.bf16.msra.mxu0 %v1196
    %1208 = vmatpush.bf16.msra.mxu0 %v1195
    %1209 = vmatpush.bf16.msra.mxu0 %v1194
    %1210 = vmatpush.bf16.msra.mxu0 %v1193
    %1211 = vmatpush.bf16.msra.mxu0 %v1192
    %1212 = vmatpush.bf16.msra.mxu0 %v1191
    %1213 = vmatpush.bf16.msra.mxu0 %v1190
    %1214 = vmatmul.bf16.gmra.mxu0 %v1126
    %v1215 = vpop.f32.mrf.mxu0
    %v1216 = vadd.f32 0.0, %v1215
    %v1217 = vpop.f32.mrf.mxu0
    %v1218 = vadd.f32 0.0, %v1217
    %1219 = vmatmul.bf16.gmra.mxu0 %v1127
    %v1220 = vpop.f32.mrf.mxu0
    %v1221 = vadd.f32 0.0, %v1220
    %v1222 = vpop.f32.mrf.mxu0
    %v1223 = vadd.f32 0.0, %v1222
    %1224 = vmatmul.bf16.gmra.mxu0 %v1128
    %v1225 = vpop.f32.mrf.mxu0
    %v1226 = vadd.f32 0.0, %v1225
    %v1227 = vpop.f32.mrf.mxu0
    %v1228 = vadd.f32 0.0, %v1227
    %1229 = vmatmul.bf16.gmra.mxu0 %v1129
    %v1230 = vpop.f32.mrf.mxu0
    %v1231 = vadd.f32 0.0, %v1230
    %v1232 = vpop.f32.mrf.mxu0
    %v1233 = vadd.f32 0.0, %v1232
    %1234 = vmatmul.bf16.gmra.mxu0 %v1130
    %v1235 = vpop.f32.mrf.mxu0
    %v1236 = vadd.f32 0.0, %v1235
    %v1237 = vpop.f32.mrf.mxu0
    %v1238 = vadd.f32 0.0, %v1237
    %1239 = vmatmul.bf16.gmra.mxu0 %v1131
    %v1240 = vpop.f32.mrf.mxu0
    %v1241 = vadd.f32 0.0, %v1240
    %v1242 = vpop.f32.mrf.mxu0
    %v1243 = vadd.f32 0.0, %v1242
    %1244 = vmatmul.bf16.gmra.mxu0 %v1132
    %v1245 = vpop.f32.mrf.mxu0
    %v1246 = vadd.f32 0.0, %v1245
    %v1247 = vpop.f32.mrf.mxu0
    %v1248 = vadd.f32 0.0, %v1247
    %1249 = vmatmul.bf16.gmra.mxu0 %v1133
    %v1250 = vpop.f32.mrf.mxu0
    %v1251 = vadd.f32 0.0, %v1250
    %v1252 = vpop.f32.mrf.mxu0
    %v1253 = vadd.f32 0.0, %v1252
    %1254 = vmatmul.bf16.gmra.mxu0 %v1134
    %v1255 = vpop.f32.mrf.mxu0
    %v1256 = vadd.f32 0.0, %v1255
    %v1257 = vpop.f32.mrf.mxu0
    %v1258 = vadd.f32 0.0, %v1257
    %1259 = vmatmul.bf16.gmra.mxu0 %v1135
    %v1260 = vpop.f32.mrf.mxu0
    %v1261 = vadd.f32 0.0, %v1260
    %v1262 = vpop.f32.mrf.mxu0
    %v1263 = vadd.f32 0.0, %v1262
    %1264 = vmatmul.bf16.gmra.mxu0 %v1136
    %v1265 = vpop.f32.mrf.mxu0
    %v1266 = vadd.f32 0.0, %v1265
    %v1267 = vpop.f32.mrf.mxu0
    %v1268 = vadd.f32 0.0, %v1267
    %1269 = vmatmul.bf16.gmra.mxu0 %v1137
    %v1270 = vpop.f32.mrf.mxu0
    %v1271 = vadd.f32 0.0, %v1270
    %v1272 = vpop.f32.mrf.mxu0
    %v1273 = vadd.f32 0.0, %v1272
    %1274 = vmatmul.bf16.gmra.mxu0 %v1138
    %v1275 = vpop.f32.mrf.mxu0
    %v1276 = vadd.f32 0.0, %v1275
    %v1277 = vpop.f32.mrf.mxu0
    %v1278 = vadd.f32 0.0, %v1277
    %1279 = vmatmul.bf16.gmra.mxu0 %v1139
    %v1280 = vpop.f32.mrf.mxu0
    %v1281 = vadd.f32 0.0, %v1280
    %v1282 = vpop.f32.mrf.mxu0
    %v1283 = vadd.f32 0.0, %v1282
    %1284 = vmatmul.bf16.gmra.mxu0 %v1140
    %v1285 = vpop.f32.mrf.mxu0
    %v1286 = vadd.f32 0.0, %v1285
    %v1287 = vpop.f32.mrf.mxu0
    %v1288 = vadd.f32 0.0, %v1287
    %1289 = vmatmul.bf16.gmra.mxu0 %v1141
    %v1290 = vpop.f32.mrf.mxu0
    %v1291 = vadd.f32 0.0, %v1290
    %v1292 = vpop.f32.mrf.mxu0
    %v1293 = vadd.f32 0.0, %v1292
    %1294 = vdwg.mxu0
    %v1295 = vmul.f32 %v1216, %v447
    %v1296 = vmul.f32 %v1218, %v452
    %v1297 = vmul.f32 %v1221, %v457
    %v1298 = vmul.f32 %v1223, %v462
    %v1299 = vmul.f32 %v1226, %v467
    %v1300 = vmul.f32 %v1228, %v472
    %v1301 = vmul.f32 %v1231, %v477
    %v1302 = vmul.f32 %v1233, %v482
    %v1303 = vmul.f32 %v1236, %v487
    %v1304 = vmul.f32 %v1238, %v492
    %v1305 = vmul.f32 %v1241, %v497
    %v1306 = vmul.f32 %v1243, %v502
    %v1307 = vmul.f32 %v1246, %v507
    %v1308 = vmul.f32 %v1248, %v512
    %v1309 = vmul.f32 %v1251, %v517
    %v1310 = vmul.f32 %v1253, %v522
    %v1311 = vmul.f32 %v1256, %v527
    %v1312 = vmul.f32 %v1258, %v532
    %v1313 = vmul.f32 %v1261, %v537
    %v1314 = vmul.f32 %v1263, %v542
    %v1315 = vmul.f32 %v1266, %v547
    %v1316 = vmul.f32 %v1268, %v552
    %v1317 = vmul.f32 %v1271, %v557
    %v1318 = vmul.f32 %v1273, %v562
    %v1319 = vmul.f32 %v1276, %v567
    %v1320 = vmul.f32 %v1278, %v572
    %v1321 = vmul.f32 %v1281, %v577
    %v1322 = vmul.f32 %v1283, %v582
    %v1323 = vmul.f32 %v1286, %v587
    %v1324 = vmul.f32 %v1288, %v592
    %v1325 = vmul.f32 %v1291, %v597
    %v1326 = vmul.f32 %v1293, %v602
    %v1327 = vpack.c.bf16 %v1296, %v1295
    %v1328 = vpack.c.bf16 %v1298, %v1297
    %v1329 = vpack.c.bf16 %v1300, %v1299
    %v1330 = vpack.c.bf16 %v1302, %v1301
    %v1331 = vpack.c.bf16 %v1304, %v1303
    %v1332 = vpack.c.bf16 %v1306, %v1305
    %v1333 = vpack.c.bf16 %v1308, %v1307
    %v1334 = vpack.c.bf16 %v1310, %v1309
    %v1335 = vpack.c.bf16 %v1312, %v1311
    %v1336 = vpack.c.bf16 %v1314, %v1313
    %v1337 = vpack.c.bf16 %v1316, %v1315
    %v1338 = vpack.c.bf16 %v1318, %v1317
    %v1339 = vpack.c.bf16 %v1320, %v1319
    %v1340 = vpack.c.bf16 %v1322, %v1321
    %v1341 = vpack.c.bf16 %v1324, %v1323
    %v1342 = vpack.c.bf16 %v1326, %v1325
    %1343 = vmatpush.bf16.msra.mxu0 %v1334
    %1344 = vmatpush.bf16.msra.mxu0 %v1333
    %1345 = vmatpush.bf16.msra.mxu0 %v1332
    %1346 = vmatpush.bf16.msra.mxu0 %v1331
    %1347 = vmatpush.bf16.msra.mxu0 %v1330
    %1348 = vmatpush.bf16.msra.mxu0 %v1329
    %1349 = vmatpush.bf16.msra.mxu0 %v1328
    %1350 = vmatpush.bf16.msra.mxu0 %v1327
    %1351 = vmatmul.bf16.gmra.mxu0 %v748
    %v1352 = vpop.f32.mrf.mxu0
    %v1353 = vadd.f32 0.0, %v1352
    %v1354 = vpop.f32.mrf.mxu0
    %v1355 = vadd.f32 0.0, %v1354
    %1356 = vmatmul.bf16.gmra.mxu0 %v750
    %v1357 = vpop.f32.mrf.mxu0
    %v1358 = vadd.f32 0.0, %v1357
    %v1359 = vpop.f32.mrf.mxu0
    %v1360 = vadd.f32 0.0, %v1359
    %1361 = vmatmul.bf16.gmra.mxu0 %v752
    %v1362 = vpop.f32.mrf.mxu0
    %v1363 = vadd.f32 0.0, %v1362
    %v1364 = vpop.f32.mrf.mxu0
    %v1365 = vadd.f32 0.0, %v1364
    %1366 = vmatmul.bf16.gmra.mxu0 %v754
    %v1367 = vpop.f32.mrf.mxu0
    %v1368 = vadd.f32 0.0, %v1367
    %v1369 = vpop.f32.mrf.mxu0
    %v1370 = vadd.f32 0.0, %v1369
    %1371 = vmatmul.bf16.gmra.mxu0 %v756
    %v1372 = vpop.f32.mrf.mxu0
    %v1373 = vadd.f32 0.0, %v1372
    %v1374 = vpop.f32.mrf.mxu0
    %v1375 = vadd.f32 0.0, %v1374
    %1376 = vmatmul.bf16.gmra.mxu0 %v758
    %v1377 = vpop.f32.mrf.mxu0
    %v1378 = vadd.f32 0.0, %v1377
    %v1379 = vpop.f32.mrf.mxu0
    %v1380 = vadd.f32 0.0, %v1379
    %1381 = vmatmul.bf16.gmra.mxu0 %v760
    %v1382 = vpop.f32.mrf.mxu0
    %v1383 = vadd.f32 0.0, %v1382
    %v1384 = vpop.f32.mrf.mxu0
    %v1385 = vadd.f32 0.0, %v1384
    %1386 = vmatmul.bf16.gmra.mxu0 %v762
    %v1387 = vpop.f32.mrf.mxu0
    %v1388 = vadd.f32 0.0, %v1387
    %v1389 = vpop.f32.mrf.mxu0
    %v1390 = vadd.f32 0.0, %v1389
    %1391 = vmatmul.bf16.gmra.mxu0 %v764
    %v1392 = vpop.f32.mrf.mxu0
    %v1393 = vadd.f32 0.0, %v1392
    %v1394 = vpop.f32.mrf.mxu0
    %v1395 = vadd.f32 0.0, %v1394
    %1396 = vmatmul.bf16.gmra.mxu0 %v766
    %v1397 = vpop.f32.mrf.mxu0
    %v1398 = vadd.f32 0.0, %v1397
    %v1399 = vpop.f32.mrf.mxu0
    %v1400 = vadd.f32 0.0, %v1399
    %1401 = vmatmul.bf16.gmra.mxu0 %v768
    %v1402 = vpop.f32.mrf.mxu0
    %v1403 = vadd.f32 0.0, %v1402
    %v1404 = vpop.f32.mrf.mxu0
    %v1405 = vadd.f32 0.0, %v1404
    %1406 = vmatmul.bf16.gmra.mxu0 %v770
    %v1407 = vpop.f32.mrf.mxu0
    %v1408 = vadd.f32 0.0, %v1407
    %v1409 = vpop.f32.mrf.mxu0
    %v1410 = vadd.f32 0.0, %v1409
    %1411 = vmatmul.bf16.gmra.mxu0 %v772
    %v1412 = vpop.f32.mrf.mxu0
    %v1413 = vadd.f32 0.0, %v1412
    %v1414 = vpop.f32.mrf.mxu0
    %v1415 = vadd.f32 0.0, %v1414
    %1416 = vmatmul.bf16.gmra.mxu0 %v774
    %v1417 = vpop.f32.mrf.mxu0
    %v1418 = vadd.f32 0.0, %v1417
    %v1419 = vpop.f32.mrf.mxu0
    %v1420 = vadd.f32 0.0, %v1419
    %1421 = vmatmul.bf16.gmra.mxu0 %v776
    %v1422 = vpop.f32.mrf.mxu0
    %v1423 = vadd.f32 0.0, %v1422
    %v1424 = vpop.f32.mrf.mxu0
    %v1425 = vadd.f32 0.0, %v1424
    %1426 = vmatmul.bf16.gmra.mxu0 %v778
    %v1427 = vpop.f32.mrf.mxu0
    %v1428 = vadd.f32 0.0, %v1427
    %v1429 = vpop.f32.mrf.mxu0
    %v1430 = vadd.f32 0.0, %v1429
    %1431 = vdwg.mxu0
    %1432 = vmatpush.bf16.msra.mxu0 %v1342
    %1433 = vmatpush.bf16.msra.mxu0 %v1341
    %1434 = vmatpush.bf16.msra.mxu0 %v1340
    %1435 = vmatpush.bf16.msra.mxu0 %v1339
    %1436 = vmatpush.bf16.msra.mxu0 %v1338
    %1437 = vmatpush.bf16.msra.mxu0 %v1337
    %1438 = vmatpush.bf16.msra.mxu0 %v1336
    %1439 = vmatpush.bf16.msra.mxu0 %v1335
    %1440 = vmatmul.bf16.gmra.mxu0 %v749
    %v1441 = vpop.f32.mrf.mxu0
    %v1442 = vadd.f32 %v1353, %v1441
    %v1443 = vpop.f32.mrf.mxu0
    %v1444 = vadd.f32 %v1355, %v1443
    %1445 = vmatmul.bf16.gmra.mxu0 %v751
    %v1446 = vpop.f32.mrf.mxu0
    %v1447 = vadd.f32 %v1358, %v1446
    %v1448 = vpop.f32.mrf.mxu0
    %v1449 = vadd.f32 %v1360, %v1448
    %1450 = vmatmul.bf16.gmra.mxu0 %v753
    %v1451 = vpop.f32.mrf.mxu0
    %v1452 = vadd.f32 %v1363, %v1451
    %v1453 = vpop.f32.mrf.mxu0
    %v1454 = vadd.f32 %v1365, %v1453
    %1455 = vmatmul.bf16.gmra.mxu0 %v755
    %v1456 = vpop.f32.mrf.mxu0
    %v1457 = vadd.f32 %v1368, %v1456
    %v1458 = vpop.f32.mrf.mxu0
    %v1459 = vadd.f32 %v1370, %v1458
    %1460 = vmatmul.bf16.gmra.mxu0 %v757
    %v1461 = vpop.f32.mrf.mxu0
    %v1462 = vadd.f32 %v1373, %v1461
    %v1463 = vpop.f32.mrf.mxu0
    %v1464 = vadd.f32 %v1375, %v1463
    %1465 = vmatmul.bf16.gmra.mxu0 %v759
    %v1466 = vpop.f32.mrf.mxu0
    %v1467 = vadd.f32 %v1378, %v1466
    %v1468 = vpop.f32.mrf.mxu0
    %v1469 = vadd.f32 %v1380, %v1468
    %1470 = vmatmul.bf16.gmra.mxu0 %v761
    %v1471 = vpop.f32.mrf.mxu0
    %v1472 = vadd.f32 %v1383, %v1471
    %v1473 = vpop.f32.mrf.mxu0
    %v1474 = vadd.f32 %v1385, %v1473
    %1475 = vmatmul.bf16.gmra.mxu0 %v763
    %v1476 = vpop.f32.mrf.mxu0
    %v1477 = vadd.f32 %v1388, %v1476
    %v1478 = vpop.f32.mrf.mxu0
    %v1479 = vadd.f32 %v1390, %v1478
    %1480 = vmatmul.bf16.gmra.mxu0 %v765
    %v1481 = vpop.f32.mrf.mxu0
    %v1482 = vadd.f32 %v1393, %v1481
    %v1483 = vpop.f32.mrf.mxu0
    %v1484 = vadd.f32 %v1395, %v1483
    %1485 = vmatmul.bf16.gmra.mxu0 %v767
    %v1486 = vpop.f32.mrf.mxu0
    %v1487 = vadd.f32 %v1398, %v1486
    %v1488 = vpop.f32.mrf.mxu0
    %v1489 = vadd.f32 %v1400, %v1488
    %1490 = vmatmul.bf16.gmra.mxu0 %v769
    %v1491 = vpop.f32.mrf.mxu0
    %v1492 = vadd.f32 %v1403, %v1491
    %v1493 = vpop.f32.mrf.mxu0
    %v1494 = vadd.f32 %v1405, %v1493
    %1495 = vmatmul.bf16.gmra.mxu0 %v771
    %v1496 = vpop.f32.mrf.mxu0
    %v1497 = vadd.f32 %v1408, %v1496
    %v1498 = vpop.f32.mrf.mxu0
    %v1499 = vadd.f32 %v1410, %v1498
    %1500 = vmatmul.bf16.gmra.mxu0 %v773
    %v1501 = vpop.f32.mrf.mxu0
    %v1502 = vadd.f32 %v1413, %v1501
    %v1503 = vpop.f32.mrf.mxu0
    %v1504 = vadd.f32 %v1415, %v1503
    %1505 = vmatmul.bf16.gmra.mxu0 %v775
    %v1506 = vpop.f32.mrf.mxu0
    %v1507 = vadd.f32 %v1418, %v1506
    %v1508 = vpop.f32.mrf.mxu0
    %v1509 = vadd.f32 %v1420, %v1508
    %1510 = vmatmul.bf16.gmra.mxu0 %v777
    %v1511 = vpop.f32.mrf.mxu0
    %v1512 = vadd.f32 %v1423, %v1511
    %v1513 = vpop.f32.mrf.mxu0
    %v1514 = vadd.f32 %v1425, %v1513
    %1515 = vmatmul.bf16.gmra.mxu0 %v779
    %v1516 = vpop.f32.mrf.mxu0
    %v1517 = vadd.f32 %v1428, %v1516
    %v1518 = vpop.f32.mrf.mxu0
    %v1519 = vadd.f32 %v1430, %v1518
    %1520 = vdwg.mxu0
    %v1521 = vmul.f32 %v1442, %v447
    %v1522 = vmul.f32 %v1444, %v452
    %v1523 = vmul.f32 %v1447, %v457
    %v1524 = vmul.f32 %v1449, %v462
    %v1525 = vmul.f32 %v1452, %v467
    %v1526 = vmul.f32 %v1454, %v472
    %v1527 = vmul.f32 %v1457, %v477
    %v1528 = vmul.f32 %v1459, %v482
    %v1529 = vmul.f32 %v1462, %v487
    %v1530 = vmul.f32 %v1464, %v492
    %v1531 = vmul.f32 %v1467, %v497
    %v1532 = vmul.f32 %v1469, %v502
    %v1533 = vmul.f32 %v1472, %v507
    %v1534 = vmul.f32 %v1474, %v512
    %v1535 = vmul.f32 %v1477, %v517
    %v1536 = vmul.f32 %v1479, %v522
    %v1537 = vmul.f32 %v1482, %v527
    %v1538 = vmul.f32 %v1484, %v532
    %v1539 = vmul.f32 %v1487, %v537
    %v1540 = vmul.f32 %v1489, %v542
    %v1541 = vmul.f32 %v1492, %v547
    %v1542 = vmul.f32 %v1494, %v552
    %v1543 = vmul.f32 %v1497, %v557
    %v1544 = vmul.f32 %v1499, %v562
    %v1545 = vmul.f32 %v1502, %v567
    %v1546 = vmul.f32 %v1504, %v572
    %v1547 = vmul.f32 %v1507, %v577
    %v1548 = vmul.f32 %v1509, %v582
    %v1549 = vmul.f32 %v1512, %v587
    %v1550 = vmul.f32 %v1514, %v592
    %v1551 = vmul.f32 %v1517, %v597
    %v1552 = vmul.f32 %v1519, %v602
    %v1553 = vld [vmem:[%s7] sm:$0x1]
    %v1555 = vperm.slane %v1553, 0
    %v1557 = vadd.f32 %v1521, %v1555
    %v1558 = vadd.f32 %v1522, %v1555
    %v1559 = vadd.f32 %v1523, %v1555
    %v1560 = vadd.f32 %v1524, %v1555
    %v1561 = vadd.f32 %v1525, %v1555
    %v1562 = vadd.f32 %v1526, %v1555
    %v1563 = vadd.f32 %v1527, %v1555
    %v1564 = vadd.f32 %v1528, %v1555
    %v1565 = vadd.f32 %v1529, %v1555
    %v1566 = vadd.f32 %v1530, %v1555
    %v1567 = vadd.f32 %v1531, %v1555
    %v1568 = vadd.f32 %v1532, %v1555
    %v1569 = vadd.f32 %v1533, %v1555
    %v1570 = vadd.f32 %v1534, %v1555
    %v1571 = vadd.f32 %v1535, %v1555
    %v1572 = vadd.f32 %v1536, %v1555
    %v1573 = vadd.f32 %v1537, %v1555
    %v1574 = vadd.f32 %v1538, %v1555
    %v1575 = vadd.f32 %v1539, %v1555
    %v1576 = vadd.f32 %v1540, %v1555
    %v1577 = vadd.f32 %v1541, %v1555
    %v1578 = vadd.f32 %v1542, %v1555
    %v1579 = vadd.f32 %v1543, %v1555
    %v1580 = vadd.f32 %v1544, %v1555
    %v1581 = vadd.f32 %v1545, %v1555
    %v1582 = vadd.f32 %v1546, %v1555
    %v1583 = vadd.f32 %v1547, %v1555
    %v1584 = vadd.f32 %v1548, %v1555
    %v1585 = vadd.f32 %v1549, %v1555
    %v1586 = vadd.f32 %v1550, %v1555
    %v1587 = vadd.f32 %v1551, %v1555
    %v1588 = vadd.f32 %v1552, %v1555
    %v1589 = vmax.f32 %v1094, %v1557
    %v1590 = vmax.f32 %v1095, %v1558
    %v1591 = vmax.f32 %v1096, %v1559
    %v1592 = vmax.f32 %v1097, %v1560
    %v1593 = vmax.f32 %v1098, %v1561
    %v1594 = vmax.f32 %v1099, %v1562
    %v1595 = vmax.f32 %v1100, %v1563
    %v1596 = vmax.f32 %v1101, %v1564
    %v1597 = vmax.f32 %v1102, %v1565
    %v1598 = vmax.f32 %v1103, %v1566
    %v1599 = vmax.f32 %v1104, %v1567
    %v1600 = vmax.f32 %v1105, %v1568
    %v1601 = vmax.f32 %v1106, %v1569
    %v1602 = vmax.f32 %v1107, %v1570
    %v1603 = vmax.f32 %v1108, %v1571
    %v1604 = vmax.f32 %v1109, %v1572
    %v1605 = vmax.f32 %v1110, %v1573
    %v1606 = vmax.f32 %v1111, %v1574
    %v1607 = vmax.f32 %v1112, %v1575
    %v1608 = vmax.f32 %v1113, %v1576
    %v1609 = vmax.f32 %v1114, %v1577
    %v1610 = vmax.f32 %v1115, %v1578
    %v1611 = vmax.f32 %v1116, %v1579
    %v1612 = vmax.f32 %v1117, %v1580
    %v1613 = vmax.f32 %v1118, %v1581
    %v1614 = vmax.f32 %v1119, %v1582
    %v1615 = vmax.f32 %v1120, %v1583
    %v1616 = vmax.f32 %v1121, %v1584
    %v1617 = vmax.f32 %v1122, %v1585
    %v1618 = vmax.f32 %v1123, %v1586
    %v1619 = vmax.f32 %v1124, %v1587
    %v1620 = vmax.f32 %v1125, %v1588
    %v1621 = vpack.c.bf16 %v1590, %v1589
    %v1622 = vpack.c.bf16 %v1592, %v1591
    %v1623 = vpack.c.bf16 %v1594, %v1593
    %v1624 = vpack.c.bf16 %v1596, %v1595
    %v1625 = vpack.c.bf16 %v1598, %v1597
    %v1626 = vpack.c.bf16 %v1600, %v1599
    %v1627 = vpack.c.bf16 %v1602, %v1601
    %v1628 = vpack.c.bf16 %v1604, %v1603
    %v1629 = vpack.c.bf16 %v1606, %v1605
    %v1630 = vpack.c.bf16 %v1608, %v1607
    %v1631 = vpack.c.bf16 %v1610, %v1609
    %v1632 = vpack.c.bf16 %v1612, %v1611
    %v1633 = vpack.c.bf16 %v1614, %v1613
    %v1634 = vpack.c.bf16 %v1616, %v1615
    %v1635 = vpack.c.bf16 %v1618, %v1617
    %v1636 = vpack.c.bf16 %v1620, %v1619
    %v1637 = vld [vmem:[#allocation8] sm:$0xf]
    %v1638 = vld [vmem:[#allocation8 + $0x4] sm:$0xf]
    %v1639 = vld [vmem:[#allocation8 + $0x8] sm:$0xf]
    %v1640 = vld [vmem:[#allocation8 + $0xc] sm:$0xf]
    %v1641 = vld [vmem:[#allocation8 + $0x10] sm:$0xf]
    %v1642 = vld [vmem:[#allocation8 + $0x14] sm:$0xf]
    %v1643 = vld [vmem:[#allocation8 + $0x18] sm:$0xf]
    %v1644 = vld [vmem:[#allocation8 + $0x1c] sm:$0xf]
    %v1645 = vld [vmem:[#allocation8 + $0x20] sm:$0xf]
    %v1646 = vld [vmem:[#allocation8 + $0x24] sm:$0xf]
    %v1647 = vld [vmem:[#allocation8 + $0x28] sm:$0xf]
    %v1648 = vld [vmem:[#allocation8 + $0x2c] sm:$0xf]
    %v1649 = vld [vmem:[#allocation8 + $0x30] sm:$0xf]
    %v1650 = vld [vmem:[#allocation8 + $0x34] sm:$0xf]
    %v1651 = vld [vmem:[#allocation8 + $0x38] sm:$0xf]
    %v1652 = vld [vmem:[#allocation8 + $0x3c] sm:$0xf]
    %v1653 = vld [vmem:[%s9] sm:$0x1]
    %v1655 = vperm.slane %v1653, 0
    %v1673 = vunpack.c.l.b16 %v1637
    %v1674 = vunpack.c.l.b16 %v1638
    %v1675 = vunpack.c.l.b16 %v1639
    %v1676 = vunpack.c.l.b16 %v1640
    %v1677 = vunpack.c.l.b16 %v1641
    %v1678 = vunpack.c.l.b16 %v1642
    %v1679 = vunpack.c.l.b16 %v1643
    %v1680 = vunpack.c.l.b16 %v1644
    %v1681 = vunpack.c.l.b16 %v1645
    %v1682 = vunpack.c.l.b16 %v1646
    %v1683 = vunpack.c.l.b16 %v1647
    %v1684 = vunpack.c.l.b16 %v1648
    %v1685 = vunpack.c.l.b16 %v1649
    %v1686 = vunpack.c.l.b16 %v1650
    %v1687 = vunpack.c.l.b16 %v1651
    %v1688 = vunpack.c.l.b16 %v1652
    %v1689 = vpack.c.b16 %v1674, %v1673
    %v1690 = vpack.c.b16 %v1676, %v1675
    %v1691 = vpack.c.b16 %v1678, %v1677
    %v1692 = vpack.c.b16 %v1680, %v1679
    %v1693 = vpack.c.b16 %v1682, %v1681
    %v1694 = vpack.c.b16 %v1684, %v1683
    %v1695 = vpack.c.b16 %v1686, %v1685
    %v1696 = vpack.c.b16 %v1688, %v1687
    %1705 = vmatpush.bf16.msra.mxu0 %v1696
    %1706 = vmatpush.bf16.msra.mxu0 %v1695
    %1707 = vmatpush.bf16.msra.mxu0 %v1694
    %1708 = vmatpush.bf16.msra.mxu0 %v1693
    %1709 = vmatpush.bf16.msra.mxu0 %v1692
    %1710 = vmatpush.bf16.msra.mxu0 %v1691
    %1711 = vmatpush.bf16.msra.mxu0 %v1690
    %1712 = vmatpush.bf16.msra.mxu0 %v1689
    %1713 = vmatmul.bf16.gmra.mxu0 %v1621
    %v1714 = vpop.f32.mrf.mxu0
    %v1715 = vadd.f32 %v1655, %v1714
    %v1716 = vpop.f32.mrf.mxu0
    %v1717 = vadd.f32 %v1655, %v1716
    %1718 = vmatmul.bf16.gmra.mxu0 %v1622
    %v1719 = vpop.f32.mrf.mxu0
    %v1720 = vadd.f32 %v1655, %v1719
    %v1721 = vpop.f32.mrf.mxu0
    %v1722 = vadd.f32 %v1655, %v1721
    %1723 = vmatmul.bf16.gmra.mxu0 %v1623
    %v1724 = vpop.f32.mrf.mxu0
    %v1725 = vadd.f32 %v1655, %v1724
    %v1726 = vpop.f32.mrf.mxu0
    %v1727 = vadd.f32 %v1655, %v1726
    %1728 = vmatmul.bf16.gmra.mxu0 %v1624
    %v1729 = vpop.f32.mrf.mxu0
    %v1730 = vadd.f32 %v1655, %v1729
    %v1731 = vpop.f32.mrf.mxu0
    %v1732 = vadd.f32 %v1655, %v1731
    %1733 = vmatmul.bf16.gmra.mxu0 %v1625
    %v1734 = vpop.f32.mrf.mxu0
    %v1735 = vadd.f32 %v1655, %v1734
    %v1736 = vpop.f32.mrf.mxu0
    %v1737 = vadd.f32 %v1655, %v1736
    %1738 = vmatmul.bf16.gmra.mxu0 %v1626
    %v1739 = vpop.f32.mrf.mxu0
    %v1740 = vadd.f32 %v1655, %v1739
    %v1741 = vpop.f32.mrf.mxu0
    %v1742 = vadd.f32 %v1655, %v1741
    %1743 = vmatmul.bf16.gmra.mxu0 %v1627
    %v1744 = vpop.f32.mrf.mxu0
    %v1745 = vadd.f32 %v1655, %v1744
    %v1746 = vpop.f32.mrf.mxu0
    %v1747 = vadd.f32 %v1655, %v1746
    %1748 = vmatmul.bf16.gmra.mxu0 %v1628
    %v1749 = vpop.f32.mrf.mxu0
    %v1750 = vadd.f32 %v1655, %v1749
    %v1751 = vpop.f32.mrf.mxu0
    %v1752 = vadd.f32 %v1655, %v1751
    %1753 = vmatmul.bf16.gmra.mxu0 %v1629
    %v1754 = vpop.f32.mrf.mxu0
    %v1755 = vadd.f32 %v1655, %v1754
    %v1756 = vpop.f32.mrf.mxu0
    %v1757 = vadd.f32 %v1655, %v1756
    %1758 = vmatmul.bf16.gmra.mxu0 %v1630
    %v1759 = vpop.f32.mrf.mxu0
    %v1760 = vadd.f32 %v1655, %v1759
    %v1761 = vpop.f32.mrf.mxu0
    %v1762 = vadd.f32 %v1655, %v1761
    %1763 = vmatmul.bf16.gmra.mxu0 %v1631
    %v1764 = vpop.f32.mrf.mxu0
    %v1765 = vadd.f32 %v1655, %v1764
    %v1766 = vpop.f32.mrf.mxu0
    %v1767 = vadd.f32 %v1655, %v1766
    %1768 = vmatmul.bf16.gmra.mxu0 %v1632
    %v1769 = vpop.f32.mrf.mxu0
    %v1770 = vadd.f32 %v1655, %v1769
    %v1771 = vpop.f32.mrf.mxu0
    %v1772 = vadd.f32 %v1655, %v1771
    %1773 = vmatmul.bf16.gmra.mxu0 %v1633
    %v1774 = vpop.f32.mrf.mxu0
    %v1775 = vadd.f32 %v1655, %v1774
    %v1776 = vpop.f32.mrf.mxu0
    %v1777 = vadd.f32 %v1655, %v1776
    %1778 = vmatmul.bf16.gmra.mxu0 %v1634
    %v1779 = vpop.f32.mrf.mxu0
    %v1780 = vadd.f32 %v1655, %v1779
    %v1781 = vpop.f32.mrf.mxu0
    %v1782 = vadd.f32 %v1655, %v1781
    %1783 = vmatmul.bf16.gmra.mxu0 %v1635
    %v1784 = vpop.f32.mrf.mxu0
    %v1785 = vadd.f32 %v1655, %v1784
    %v1786 = vpop.f32.mrf.mxu0
    %v1787 = vadd.f32 %v1655, %v1786
    %1788 = vmatmul.bf16.gmra.mxu0 %v1636
    %v1789 = vpop.f32.mrf.mxu0
    %v1790 = vadd.f32 %v1655, %v1789
    %v1791 = vpop.f32.mrf.mxu0
    %v1792 = vadd.f32 %v1655, %v1791
    %1793 = vdwg.mxu0
    %1794 = vst [vmem:[#allocation10] sm:$0xff] %v1715
    %1795 = vst [vmem:[#allocation10 + $0x8] sm:$0xff] %v1717
    %1796 = vst [vmem:[#allocation10 + $0x10] sm:$0xff] %v1720
    %1797 = vst [vmem:[#allocation10 + $0x18] sm:$0xff] %v1722
    %1798 = vst [vmem:[#allocation10 + $0x20] sm:$0xff] %v1725
    %1799 = vst [vmem:[#allocation10 + $0x28] sm:$0xff] %v1727
    %1800 = vst [vmem:[#allocation10 + $0x30] sm:$0xff] %v1730
    %1801 = vst [vmem:[#allocation10 + $0x38] sm:$0xff] %v1732
    %1802 = vst [vmem:[#allocation10 + $0x40] sm:$0xff] %v1735
    %1803 = vst [vmem:[#allocation10 + $0x48] sm:$0xff] %v1737
    %1804 = vst [vmem:[#allocation10 + $0x50] sm:$0xff] %v1740
    %1805 = vst [vmem:[#allocation10 + $0x58] sm:$0xff] %v1742
    %1806 = vst [vmem:[#allocation10 + $0x60] sm:$0xff] %v1745
    %1807 = vst [vmem:[#allocation10 + $0x68] sm:$0xff] %v1747
    %1808 = vst [vmem:[#allocation10 + $0x70] sm:$0xff] %v1750
    %1809 = vst [vmem:[#allocation10 + $0x78] sm:$0xff] %v1752
    %1810 = vst [vmem:[#allocation10 + $0x80] sm:$0xff] %v1755
    %1811 = vst [vmem:[#allocation10 + $0x88] sm:$0xff] %v1757
    %1812 = vst [vmem:[#allocation10 + $0x90] sm:$0xff] %v1760
    %1813 = vst [vmem:[#allocation10 + $0x98] sm:$0xff] %v1762
    %1814 = vst [vmem:[#allocation10 + $0xa0] sm:$0xff] %v1765
    %1815 = vst [vmem:[#allocation10 + $0xa8] sm:$0xff] %v1767
    %1816 = vst [vmem:[#allocation10 + $0xb0] sm:$0xff] %v1770
    %1817 = vst [vmem:[#allocation10 + $0xb8] sm:$0xff] %v1772
    %1818 = vst [vmem:[#allocation10 + $0xc0] sm:$0xff] %v1775
    %1819 = vst [vmem:[#allocation10 + $0xc8] sm:$0xff] %v1777
    %1820 = vst [vmem:[#allocation10 + $0xd0] sm:$0xff] %v1780
    %1821 = vst [vmem:[#allocation10 + $0xd8] sm:$0xff] %v1782
    %1822 = vst [vmem:[#allocation10 + $0xe0] sm:$0xff] %v1785
    %1823 = vst [vmem:[#allocation10 + $0xe8] sm:$0xff] %v1787
    %1824 = vst [vmem:[#allocation10 + $0xf0] sm:$0xff] %v1790
    %1825 = vst [vmem:[#allocation10 + $0xf8] sm:$0xff] %v1792
    // Predicated region
    $region58: #{tpu_custom_call.1} parent=1 // pred_check
      _
    $region59: #{tpu_custom_call.1} parent=1 // pred_check_branch
      %1827 = sbr.rel (0) target = $region61
    $region60: #{tpu_custom_call.1} parent=1 // pred_region
      %1829 = vsyncadd [#allocation4], 0
      %s1830 = sshll.u32 [#allocation10], 4
      %s1831 = int_to_ptr.vmem [resolvable:$true] %s1830
      %s1832 = sshll.u32 %s10, 4
      %s1833 = int_to_ptr.hbm [resolvable:$true] %s1832
      %1838 = dma.vmem_to_hbm [thread:$0]  %s1831, 4096, %s1833, [#allocation4], 128, 128, 8
    $region61: #{tpu_custom_call.1} parent=1 // pred_fallthru
      _
    // Predicated region
    $region62: #{tpu_custom_call.1} parent=1 // pred_check
      _
    $region63: #{tpu_custom_call.1} parent=1 // pred_check_branch
      %1840 = sbr.rel (0) target = $region65
    $region64: #{tpu_custom_call.1} parent=1 // pred_region
      %1842 = dma.done [#allocation4], 4096
    $region65: #{tpu_custom_call.1} parent=1 // pred_fallthru
      _
    %1843 = vsyncpa [#allocation3], 1
    %1844 = vsyncpa [#allocation6], 1
    %1845 = vsyncpa [#allocation9], 1
    %1846 = vsyncpa [#allocation4], 1

</llo_original>
